<compile_context>
chip_gen: v7x
topology: tpu7x:2x2x1
jax: 0.10.0
libtpu: 0.0.40
codegen_flags: <defaults>
</compile_context>

<pallas_src>
import functools
import numpy as np
import jax
import jax.numpy as jnp
from jax.experimental import pallas as pl
from jax.experimental.pallas import tpu as pltpu

# ---- hyper-parameters (small, consistent with the module) -------------------
EMBED = 32            # embed_size
HIDDEN = 32           # hidden_size (== EMBED so layer-0 W_ih hoisting is clean)
VOCAB = 48            # vocab_size
NUM_LAYERS = 2        # num_layers
BATCH = 4
SEQ = 8               # caption length T; full sequence is T+1 after prepending features
LENGTHS = [9, 7, 5, 3]  # sorted descending (pack_padded_sequence default enforce_sorted=True)

SUBLANE = 8
LANE = 128


def _round_up(x, m):
    return ((x + m - 1) // m) * m


# ----------------------------- Pallas kernel ----------------------------------
def _decoder_kernel(x_ref, wih0_ref, whh0_ref, wcat_ref, b_ref,
                    sel_ref, wlin_ref, blin_ref, out_ref, *, Tp, B):
    """Fused stacked-LSTM recurrence + packed-row select + vocab projection.

    x_ref    : (Tp*B, E)      time-major flattened inputs (batch already padded)
    wih0_ref : (E, 4H)        layer-0 input weights (pre-transposed)
    whh0_ref : (H, 4H)        layer-0 hidden weights
    wcat_ref : (L-1, 2H, 4H)  [W_ih; W_hh] stacked along the input dim (layers 1..L-1)
    b_ref    : (L, 1, 4H)     b_ih + b_hh
    sel_ref  : (NPp, Tp*B)    static 0/1 packed-sequence row-selection matrix
    wlin_ref : (H, Vp)        vocab projection (lane-padded to 128)
    blin_ref : (1, Vp)
    out_ref  : (NPp, Vp)      logits for the packed (valid) rows only
    """
    L = b_ref.shape[0]
    H = whh0_ref.shape[0]

    # ---- hoist every loop-invariant ref read / broadcast out of the loop ----
    wih0 = wih0_ref[...]
    whh0 = whh0_ref[...]
    wcats = [wcat_ref[l] for l in range(L - 1)]
    b0 = b_ref[0]
    biases = [jnp.broadcast_to(b_ref[l], (B, 4 * H)) for l in range(L)]
    wlin = wlin_ref[...]
    blin = blin_ref[...]
    sel = sel_ref[...]

    # Hoisted layer-0 input projection for all time steps (no time dependency):
    # one well-shaped (Tp*B, E) @ (E, 4H) matmul instead of Tp tiny ones.
    xproj = jnp.dot(x_ref[...], wih0, preferred_element_type=jnp.float32) + b0

    def lstm_cell(gates, c_prev):
        # Whole-vreg EUP pushes first, then cheap 32-lane extracts (perf review).
        sig = jax.nn.sigmoid(gates)                  # (B, 4H)
        th = jnp.tanh(gates)                         # (B, 4H)
        i_g = sig[:, 0 * H:1 * H]
        f_g = sig[:, 1 * H:2 * H]
        g_g = th[:, 2 * H:3 * H]
        o_g = sig[:, 3 * H:4 * H]
        c_new = f_g * c_prev + i_g * g_g
        h_new = o_g * jnp.tanh(c_new)
        return h_new, c_new

    hs = [jnp.zeros((B, H), jnp.float32) for _ in range(L)]
    cs = [jnp.zeros((B, H), jnp.float32) for _ in range(L)]
    h_last = []

    # Static Python loop: every slice offset is a compile-time, 8-aligned constant.
    for t in range(Tp):
        # Layer 0: input projection precomputed; only the recurrent matmul remains.
        g0 = xproj[t * B:(t + 1) * B, :] + jnp.dot(
            hs[0], whh0, preferred_element_type=jnp.float32)
        hs[0], cs[0] = lstm_cell(g0, cs[0])
        inp = hs[0]
        # Layers 1..L-1: single merged [inp; h] @ [W_ih; W_hh] matmul per layer-step.
        for l in range(1, L):
            cat = jnp.concatenate([inp, hs[l]], axis=-1)          # (B, 2H)
            g = jnp.dot(cat, wcats[l - 1],
                        preferred_element_type=jnp.float32) + biases[l]
            hs[l], cs[l] = lstm_cell(g, cs[l])
            inp = hs[l]
        h_last.append(inp)                                        # last-layer hidden

    # Packed-sequence row selection as a tiny MXU matmul (static 0/1 matrix),
    # then fused vocab projection on the selected rows (all resident in vregs).
    hid_all = jnp.concatenate(h_last, axis=0)                     # (Tp*B, H), aligned
    packed_h = jnp.dot(sel, hid_all, preferred_element_type=jnp.float32)   # (NPp, H)
    out_ref[...] = (jnp.dot(packed_h, wlin,
                            preferred_element_type=jnp.float32) + blin)


# ------------------------------- wrapper --------------------------------------
def decoder_fused_pallas(x_flat, wih0, whh0, wcat, b, sel, wlin, blin, *, Tp, B):
    NB, E = x_flat.shape
    H = whh0.shape[0]
    Vp = wlin.shape[1]
    L = b.shape[0]
    NPp = sel.shape[0]
    kernel = functools.partial(_decoder_kernel, Tp=Tp, B=B)
    return pl.pallas_call(
        kernel,
        out_shape=jax.ShapeDtypeStruct((NPp, Vp), jnp.float32),
        grid_spec=pltpu.PrefetchScalarGridSpec(
            num_scalar_prefetch=0,
            grid=(1,),
            in_specs=[
                pl.BlockSpec((NB, E), lambda i: (0, 0)),
                pl.BlockSpec((E, 4 * H), lambda i: (0, 0)),
                pl.BlockSpec((H, 4 * H), lambda i: (0, 0)),
                pl.BlockSpec((L - 1, 2 * H, 4 * H), lambda i: (0, 0, 0)),
                pl.BlockSpec((L, 1, 4 * H), lambda i: (0, 0, 0)),
                pl.BlockSpec((NPp, NB), lambda i: (0, 0)),
                pl.BlockSpec((H, Vp), lambda i: (0, 0)),
                pl.BlockSpec((1, Vp), lambda i: (0, 0)),
            ],
            out_specs=pl.BlockSpec((NPp, Vp), lambda i: (0, 0)),
        ),
        compiler_params=pltpu.CompilerParams(
            # serial time recurrence inside; grid is a single step -> "arbitrary"
            dimension_semantics=("arbitrary",)),
    )(x_flat, wih0, whh0, wcat, b, sel, wlin, blin)


# --------------------------- full forward (DecoderRNN.forward) ----------------
def init_params(key):
    ks = jax.random.split(key, 6)
    s = 0.1
    H, E, V, L = HIDDEN, EMBED, VOCAB, NUM_LAYERS
    assert E == H, "layer-0 hoisting with stacked per-layer weights assumes E == H"
    return {
        "embed": jax.random.normal(ks[0], (V, E), jnp.float32) * s,
        # PyTorch stores W_ih:(4H,E), W_hh:(4H,H); we keep them pre-transposed.
        "w_ih": jax.random.normal(ks[1], (L, E, 4 * H), jnp.float32) * s,
        "w_hh": jax.random.normal(ks[2], (L, H, 4 * H), jnp.float32) * s,
        "b":    jax.random.normal(ks[3], (L, 1, 4 * H), jnp.float32) * s,  # b_ih + b_hh
        "w_lin": jax.random.normal(ks[4], (H, V), jnp.float32) * s,
        "b_lin": jax.random.normal(ks[5], (1, V), jnp.float32) * s,
    }


def prep_kernel_params(params):
    """Derive the kernel-layout weights from the 'raw' (PyTorch-like) params."""
    V = params["w_lin"].shape[1]
    Vp = _round_up(V, LANE)
    return {
        "w_ih0": params["w_ih"][0],                                   # (E, 4H)
        "w_hh0": params["w_hh"][0],                                   # (H, 4H)
        # layers 1..L-1: concat along the input dim -> (L-1, E+H, 4H)
        "w_cat": jnp.concatenate([params["w_ih"][1:], params["w_hh"][1:]], axis=1),
        "b": params["b"],                                             # (L, 1, 4H)
        "w_lin_pad": jnp.pad(params["w_lin"], ((0, 0), (0, Vp - V))),  # (H, Vp)
        "b_lin_pad": jnp.pad(params["b_lin"], ((0, 0), (0, Vp - V))),  # (1, Vp)
    }


def build_selection(lengths, Tp, B_pad):
    """Static 0/1 matrix mapping (t*B_pad + b) rows -> packed_padded_sequence rows."""
    n_packed = sum(lengths)
    np_pad = _round_up(max(n_packed, 1), SUBLANE)
    S = np.zeros((np_pad, Tp * B_pad), np.float32)
    r = 0
    for t in range(Tp):
        bs = sum(1 for ln in lengths if ln > t)
        for b in range(bs):
            S[r, t * B_pad + b] = 1.0
            r += 1
    return jnp.asarray(S), n_packed


def decoder_forward(params, features, captions, lengths):
    """features: (B, E) f32, captions: (B, T) int32, lengths: static python list."""
    B = features.shape[0]
    kp = prep_kernel_params(params)

    emb = jnp.take(params["embed"], captions, axis=0)                     # (B, T, E)
    embeddings = jnp.concatenate([features[:, None, :], emb], axis=1)     # (B, T+1, E)
    x_tbe = jnp.transpose(embeddings, (1, 0, 2))                          # (T+1, B, E)
    Tp = x_tbe.shape[0]

    # Pad batch to a full sublane tile (4 -> 8): full-vreg VPU ops / stores.
    B_pad = _round_up(B, SUBLANE)
    if B_pad != B:
        x_tbe = jnp.pad(x_tbe, ((0, 0), (0, B_pad - B), (0, 0)))
    x_flat = x_tbe.reshape(Tp * B_pad, EMBED)                             # (Tp*Bp, E)

    # pack_padded_sequence(batch_first=True) ordering (time-major, lengths sorted
    # descending) folded into the kernel via a static selection matrix.
    sel, n_packed = build_selection(lengths, Tp, B_pad)

    logits = decoder_fused_pallas(
        x_flat, kp["w_ih0"], kp["w_hh0"], kp["w_cat"], kp["b"],
        sel, kp["w_lin_pad"], kp["b_lin_pad"], Tp=Tp, B=B_pad)            # (NPp, Vp)

    return logits[:n_packed, :VOCAB]                                      # (sum(len), V)


# ------------------------------ pure-JAX reference -----------------------------
def decoder_forward_ref(params, features, captions, lengths):
    H, L = HIDDEN, NUM_LAYERS
    emb = jnp.take(params["embed"], captions, axis=0)
    embeddings = jnp.concatenate([features[:, None, :], emb], axis=1)
    x_tbe = jnp.transpose(embeddings, (1, 0, 2))
    Tp, B, _ = x_tbe.shape
    h = jnp.zeros((L, B, H)); c = jnp.zeros((L, B, H))
    outs = []
    for t in range(Tp):
        inp = x_tbe[t]
        hs, cs = [], []
        for l in range(L):
            gates = inp @ params["w_ih"][l] + h[l] @ params["w_hh"][l] + params["b"][l]
            i_g = jax.nn.sigmoid(gates[:, 0 * H:1 * H])
            f_g = jax.nn.sigmoid(gates[:, 1 * H:2 * H])
            g_g = jnp.tanh(gates[:, 2 * H:3 * H])
            o_g = jax.nn.sigmoid(gates[:, 3 * H:4 * H])
            cn = f_g * c[l] + i_g * g_g
            hn = o_g * jnp.tanh(cn)
            hs.append(hn); cs.append(cn)
            inp = hn
        h = jnp.stack(hs); c = jnp.stack(cs)
        outs.append(inp)
    hiddens = jnp.stack(outs)
    rows = []
    for t in range(Tp):
        bs = sum(1 for ln in lengths if ln > t)
        if bs == 0:
            break
        rows.append(hiddens[t, :bs, :])
    packed_h = jnp.concatenate(rows, axis=0)
    return packed_h @ params["w_lin"] + params["b_lin"]


# ----------------------------------- main --------------------------------------
if __name__ == "__main__":
    key = jax.random.PRNGKey(0)
    k_par, k_feat, k_cap = jax.random.split(key, 3)

    params = init_params(k_par)
    features = jax.random.normal(k_feat, (BATCH, EMBED), jnp.float32)
    captions = jax.random.randint(k_cap, (BATCH, SEQ), 0, VOCAB, jnp.int32)

    out = decoder_forward(params, features, captions, LENGTHS)
    out = jax.block_until_ready(out)

    ref = decoder_forward_ref(params, features, captions, LENGTHS)
    assert out.shape == (sum(LENGTHS), VOCAB), out.shape
    np.testing.assert_allclose(np.asarray(out), np.asarray(ref), atol=5e-3, rtol=5e-3)

    print("KERNEL_OK")
</pallas_src>

<mosaic_0001>
module attributes {stable_mosaic.version = 11 : i64} {
  func.func @_decoder_kernel(%arg0: i32, %arg1: memref<72x32xf32, #tpu.memory_space<vmem>>, %arg2: memref<32x128xf32, #tpu.memory_space<vmem>>, %arg3: memref<32x128xf32, #tpu.memory_space<vmem>>, %arg4: memref<1x64x128xf32, #tpu.memory_space<vmem>>, %arg5: memref<2x1x128xf32, #tpu.memory_space<vmem>>, %arg6: memref<24x72xf32, #tpu.memory_space<vmem>>, %arg7: memref<32x128xf32, #tpu.memory_space<vmem>>, %arg8: memref<1x128xf32, #tpu.memory_space<vmem>>, %arg9: memref<24x128xf32, #tpu.memory_space<vmem>>) attributes {dimension_semantics = [#tpu.dimension_semantics<arbitrary>], iteration_bounds = array<i64: 1>, scalar_prefetch = 0 : i64, scratch_operands = 0 : i64, tpu.core_type = #tpu.core_type<tc>, window_params = [{pipeline_mode = #tpu.pipeline_mode<synchronous>, transform_indices = @transform_0, window_bounds = array<i64: 72, 32>}, {pipeline_mode = #tpu.pipeline_mode<synchronous>, transform_indices = @transform_1, window_bounds = array<i64: 32, 128>}, {pipeline_mode = #tpu.pipeline_mode<synchronous>, transform_indices = @transform_2, window_bounds = array<i64: 32, 128>}, {pipeline_mode = #tpu.pipeline_mode<synchronous>, transform_indices = @transform_3, window_bounds = array<i64: 1, 64, 128>}, {pipeline_mode = #tpu.pipeline_mode<synchronous>, transform_indices = @transform_4, window_bounds = array<i64: 2, 1, 128>}, {pipeline_mode = #tpu.pipeline_mode<synchronous>, transform_indices = @transform_5, window_bounds = array<i64: 24, 72>}, {pipeline_mode = #tpu.pipeline_mode<synchronous>, transform_indices = @transform_6, window_bounds = array<i64: 32, 128>}, {pipeline_mode = #tpu.pipeline_mode<synchronous>, transform_indices = @transform_7, window_bounds = array<i64: 1, 128>}, {pipeline_mode = #tpu.pipeline_mode<synchronous>, transform_indices = @transform_8, window_bounds = array<i64: 24, 128>}]} {
    %c0 = arith.constant 0 : index
    %c0_0 = arith.constant 0 : index
    %0 = vector.load %arg2[%c0, %c0_0] : memref<32x128xf32, #tpu.memory_space<vmem>>, vector<32x128xf32>
    %c0_1 = arith.constant 0 : index
    %c0_2 = arith.constant 0 : index
    %1 = vector.load %arg3[%c0_1, %c0_2] : memref<32x128xf32, #tpu.memory_space<vmem>>, vector<32x128xf32>
    %c0_3 = arith.constant 0 : index
    %c0_4 = arith.constant 0 : index
    %c0_5 = arith.constant 0 : index
    %2 = vector.load %arg4[%c0_3, %c0_4, %c0_5] : memref<1x64x128xf32, #tpu.memory_space<vmem>>, vector<1x64x128xf32>
    %3 = vector.shape_cast %2 : vector<1x64x128xf32> to vector<64x128xf32>
    %c0_6 = arith.constant 0 : index
    %c0_7 = arith.constant 0 : index
    %c0_8 = arith.constant 0 : index
    %4 = vector.load %arg5[%c0_6, %c0_7, %c0_8] : memref<2x1x128xf32, #tpu.memory_space<vmem>>, vector<1x1x128xf32>
    %5 = vector.shape_cast %4 : vector<1x1x128xf32> to vector<1x128xf32>
    %c1 = arith.constant 1 : index
    %c0_9 = arith.constant 0 : index
    %c0_10 = arith.constant 0 : index
    %6 = vector.load %arg5[%c1, %c0_9, %c0_10] : memref<2x1x128xf32, #tpu.memory_space<vmem>>, vector<1x1x128xf32>
    %7 = vector.shape_cast %6 : vector<1x1x128xf32> to vector<1x128xf32>
    %8 = vector.shape_cast %7 : vector<1x128xf32> to vector<1x128xf32>
    %9 = vector.broadcast %8 : vector<1x128xf32> to vector<8x128xf32>
    %c0_11 = arith.constant 0 : index
    %c0_12 = arith.constant 0 : index
    %10 = vector.load %arg7[%c0_11, %c0_12] : memref<32x128xf32, #tpu.memory_space<vmem>>, vector<32x128xf32>
    %c0_13 = arith.constant 0 : index
    %c0_14 = arith.constant 0 : index
    %11 = vector.load %arg8[%c0_13, %c0_14] : memref<1x128xf32, #tpu.memory_space<vmem>>, vector<1x128xf32>
    %c0_15 = arith.constant 0 : index
    %c0_16 = arith.constant 0 : index
    %12 = vector.load %arg6[%c0_15, %c0_16] : memref<24x72xf32, #tpu.memory_space<vmem>>, vector<24x72xf32>
    %c0_17 = arith.constant 0 : index
    %c0_18 = arith.constant 0 : index
    %13 = vector.load %arg1[%c0_17, %c0_18] : memref<72x32xf32, #tpu.memory_space<vmem>>, vector<72x32xf32>
    %cst = arith.constant dense<0.000000e+00> : vector<72x128xf32>
    %14 = tpu.matmul %13, %0, %cst {dimension_numbers = #tpu.dot_dimension_numbers<[1], [0], [0], [1], [0, 0, 1, 1], [], []>} : vector<72x32xf32>, vector<32x128xf32>, vector<72x128xf32> -> vector<72x128xf32>
    %15 = vector.broadcast %5 : vector<1x128xf32> to vector<72x128xf32>
    %16 = arith.addf %14, %15 : vector<72x128xf32>
    %cst_19 = arith.constant 0.000000e+00 : f32
    %17 = vector.broadcast %cst_19 : f32 to vector<8x32xf32>
    %cst_20 = arith.constant 0.000000e+00 : f32
    %18 = vector.broadcast %cst_20 : f32 to vector<8x32xf32>
    %cst_21 = arith.constant 0.000000e+00 : f32
    %19 = vector.broadcast %cst_21 : f32 to vector<8x32xf32>
    %cst_22 = arith.constant 0.000000e+00 : f32
    %20 = vector.broadcast %cst_22 : f32 to vector<8x32xf32>
    %21 = vector.extract_strided_slice %16 {offsets = [0, 0], sizes = [8, 128], strides = [1, 1]} : vector<72x128xf32> to vector<8x128xf32>
    %cst_23 = arith.constant dense<0.000000e+00> : vector<8x128xf32>
    %22 = tpu.matmul %17, %1, %cst_23 {dimension_numbers = #tpu.dot_dimension_numbers<[1], [0], [0], [1], [0, 0, 1, 1], [], []>} : vector<8x32xf32>, vector<32x128xf32>, vector<8x128xf32> -> vector<8x128xf32>
    %23 = arith.addf %21, %22 : vector<8x128xf32>
    %24 = arith.negf %23 : vector<8x128xf32>
    %25 = math.exp %24 : vector<8x128xf32>
    %cst_24 = arith.constant 1.000000e+00 : f32
    %26 = vector.broadcast %cst_24 : f32 to vector<8x128xf32>
    %27 = arith.addf %26, %25 : vector<8x128xf32>
    %28 = arith.divf %26, %27 : vector<8x128xf32>
    %29 = math.tanh %23 : vector<8x128xf32>
    %30 = vector.extract_strided_slice %28 {offsets = [0, 0], sizes = [8, 32], strides = [1, 1]} : vector<8x128xf32> to vector<8x32xf32>
    %31 = vector.extract_strided_slice %28 {offsets = [0, 32], sizes = [8, 32], strides = [1, 1]} : vector<8x128xf32> to vector<8x32xf32>
    %32 = vector.extract_strided_slice %29 {offsets = [0, 64], sizes = [8, 32], strides = [1, 1]} : vector<8x128xf32> to vector<8x32xf32>
    %33 = vector.extract_strided_slice %28 {offsets = [0, 96], sizes = [8, 32], strides = [1, 1]} : vector<8x128xf32> to vector<8x32xf32>
    %34 = arith.mulf %31, %19 : vector<8x32xf32>
    %35 = arith.mulf %30, %32 : vector<8x32xf32>
    %36 = arith.addf %34, %35 : vector<8x32xf32>
    %37 = math.tanh %36 : vector<8x32xf32>
    %38 = arith.mulf %33, %37 : vector<8x32xf32>
    %39 = tpu.concatenate %38, %18 in 1 : vector<8x32xf32>, vector<8x32xf32> -> vector<8x64xf32>
    %cst_25 = arith.constant dense<0.000000e+00> : vector<8x128xf32>
    %40 = tpu.matmul %39, %3, %cst_25 {dimension_numbers = #tpu.dot_dimension_numbers<[1], [0], [0], [1], [0, 0, 1, 1], [], []>} : vector<8x64xf32>, vector<64x128xf32>, vector<8x128xf32> -> vector<8x128xf32>
    %41 = arith.addf %40, %9 : vector<8x128xf32>
    %42 = arith.negf %41 : vector<8x128xf32>
    %43 = math.exp %42 : vector<8x128xf32>
    %cst_26 = arith.constant 1.000000e+00 : f32
    %44 = vector.broadcast %cst_26 : f32 to vector<8x128xf32>
    %45 = arith.addf %44, %43 : vector<8x128xf32>
    %46 = arith.divf %44, %45 : vector<8x128xf32>
    %47 = math.tanh %41 : vector<8x128xf32>
    %48 = vector.extract_strided_slice %46 {offsets = [0, 0], sizes = [8, 32], strides = [1, 1]} : vector<8x128xf32> to vector<8x32xf32>
    %49 = vector.extract_strided_slice %46 {offsets = [0, 32], sizes = [8, 32], strides = [1, 1]} : vector<8x128xf32> to vector<8x32xf32>
    %50 = vector.extract_strided_slice %47 {offsets = [0, 64], sizes = [8, 32], strides = [1, 1]} : vector<8x128xf32> to vector<8x32xf32>
    %51 = vector.extract_strided_slice %46 {offsets = [0, 96], sizes = [8, 32], strides = [1, 1]} : vector<8x128xf32> to vector<8x32xf32>
    %52 = arith.mulf %49, %20 : vector<8x32xf32>
    %53 = arith.mulf %48, %50 : vector<8x32xf32>
    %54 = arith.addf %52, %53 : vector<8x32xf32>
    %55 = math.tanh %54 : vector<8x32xf32>
    %56 = arith.mulf %51, %55 : vector<8x32xf32>
    %57 = vector.extract_strided_slice %16 {offsets = [8, 0], sizes = [8, 128], strides = [1, 1]} : vector<72x128xf32> to vector<8x128xf32>
    %cst_27 = arith.constant dense<0.000000e+00> : vector<8x128xf32>
    %58 = tpu.matmul %38, %1, %cst_27 {dimension_numbers = #tpu.dot_dimension_numbers<[1], [0], [0], [1], [0, 0, 1, 1], [], []>} : vector<8x32xf32>, vector<32x128xf32>, vector<8x128xf32> -> vector<8x128xf32>
    %59 = arith.addf %57, %58 : vector<8x128xf32>
    %60 = arith.negf %59 : vector<8x128xf32>
    %61 = math.exp %60 : vector<8x128xf32>
    %cst_28 = arith.constant 1.000000e+00 : f32
    %62 = vector.broadcast %cst_28 : f32 to vector<8x128xf32>
    %63 = arith.addf %62, %61 : vector<8x128xf32>
    %64 = arith.divf %62, %63 : vector<8x128xf32>
    %65 = math.tanh %59 : vector<8x128xf32>
    %66 = vector.extract_strided_slice %64 {offsets = [0, 0], sizes = [8, 32], strides = [1, 1]} : vector<8x128xf32> to vector<8x32xf32>
    %67 = vector.extract_strided_slice %64 {offsets = [0, 32], sizes = [8, 32], strides = [1, 1]} : vector<8x128xf32> to vector<8x32xf32>
    %68 = vector.extract_strided_slice %65 {offsets = [0, 64], sizes = [8, 32], strides = [1, 1]} : vector<8x128xf32> to vector<8x32xf32>
    %69 = vector.extract_strided_slice %64 {offsets = [0, 96], sizes = [8, 32], strides = [1, 1]} : vector<8x128xf32> to vector<8x32xf32>
    %70 = arith.mulf %67, %36 : vector<8x32xf32>
    %71 = arith.mulf %66, %68 : vector<8x32xf32>
    %72 = arith.addf %70, %71 : vector<8x32xf32>
    %73 = math.tanh %72 : vector<8x32xf32>
    %74 = arith.mulf %69, %73 : vector<8x32xf32>
    %75 = tpu.concatenate %74, %56 in 1 : vector<8x32xf32>, vector<8x32xf32> -> vector<8x64xf32>
    %cst_29 = arith.constant dense<0.000000e+00> : vector<8x128xf32>
    %76 = tpu.matmul %75, %3, %cst_29 {dimension_numbers = #tpu.dot_dimension_numbers<[1], [0], [0], [1], [0, 0, 1, 1], [], []>} : vector<8x64xf32>, vector<64x128xf32>, vector<8x128xf32> -> vector<8x128xf32>
    %77 = arith.addf %76, %9 : vector<8x128xf32>
    %78 = arith.negf %77 : vector<8x128xf32>
    %79 = math.exp %78 : vector<8x128xf32>
    %cst_30 = arith.constant 1.000000e+00 : f32
    %80 = vector.broadcast %cst_30 : f32 to vector<8x128xf32>
    %81 = arith.addf %80, %79 : vector<8x128xf32>
    %82 = arith.divf %80, %81 : vector<8x128xf32>
    %83 = math.tanh %77 : vector<8x128xf32>
    %84 = vector.extract_strided_slice %82 {offsets = [0, 0], sizes = [8, 32], strides = [1, 1]} : vector<8x128xf32> to vector<8x32xf32>
    %85 = vector.extract_strided_slice %82 {offsets = [0, 32], sizes = [8, 32], strides = [1, 1]} : vector<8x128xf32> to vector<8x32xf32>
    %86 = vector.extract_strided_slice %83 {offsets = [0, 64], sizes = [8, 32], strides = [1, 1]} : vector<8x128xf32> to vector<8x32xf32>
    %87 = vector.extract_strided_slice %82 {offsets = [0, 96], sizes = [8, 32], strides = [1, 1]} : vector<8x128xf32> to vector<8x32xf32>
    %88 = arith.mulf %85, %54 : vector<8x32xf32>
    %89 = arith.mulf %84, %86 : vector<8x32xf32>
    %90 = arith.addf %88, %89 : vector<8x32xf32>
    %91 = math.tanh %90 : vector<8x32xf32>
    %92 = arith.mulf %87, %91 : vector<8x32xf32>
    %93 = vector.extract_strided_slice %16 {offsets = [16, 0], sizes = [8, 128], strides = [1, 1]} : vector<72x128xf32> to vector<8x128xf32>
    %cst_31 = arith.constant dense<0.000000e+00> : vector<8x128xf32>
    %94 = tpu.matmul %74, %1, %cst_31 {dimension_numbers = #tpu.dot_dimension_numbers<[1], [0], [0], [1], [0, 0, 1, 1], [], []>} : vector<8x32xf32>, vector<32x128xf32>, vector<8x128xf32> -> vector<8x128xf32>
    %95 = arith.addf %93, %94 : vector<8x128xf32>
    %96 = arith.negf %95 : vector<8x128xf32>
    %97 = math.exp %96 : vector<8x128xf32>
    %cst_32 = arith.constant 1.000000e+00 : f32
    %98 = vector.broadcast %cst_32 : f32 to vector<8x128xf32>
    %99 = arith.addf %98, %97 : vector<8x128xf32>
    %100 = arith.divf %98, %99 : vector<8x128xf32>
    %101 = math.tanh %95 : vector<8x128xf32>
    %102 = vector.extract_strided_slice %100 {offsets = [0, 0], sizes = [8, 32], strides = [1, 1]} : vector<8x128xf32> to vector<8x32xf32>
    %103 = vector.extract_strided_slice %100 {offsets = [0, 32], sizes = [8, 32], strides = [1, 1]} : vector<8x128xf32> to vector<8x32xf32>
    %104 = vector.extract_strided_slice %101 {offsets = [0, 64], sizes = [8, 32], strides = [1, 1]} : vector<8x128xf32> to vector<8x32xf32>
    %105 = vector.extract_strided_slice %100 {offsets = [0, 96], sizes = [8, 32], strides = [1, 1]} : vector<8x128xf32> to vector<8x32xf32>
    %106 = arith.mulf %103, %72 : vector<8x32xf32>
    %107 = arith.mulf %102, %104 : vector<8x32xf32>
    %108 = arith.addf %106, %107 : vector<8x32xf32>
    %109 = math.tanh %108 : vector<8x32xf32>
    %110 = arith.mulf %105, %109 : vector<8x32xf32>
    %111 = tpu.concatenate %110, %92 in 1 : vector<8x32xf32>, vector<8x32xf32> -> vector<8x64xf32>
    %cst_33 = arith.constant dense<0.000000e+00> : vector<8x128xf32>
    %112 = tpu.matmul %111, %3, %cst_33 {dimension_numbers = #tpu.dot_dimension_numbers<[1], [0], [0], [1], [0, 0, 1, 1], [], []>} : vector<8x64xf32>, vector<64x128xf32>, vector<8x128xf32> -> vector<8x128xf32>
    %113 = arith.addf %112, %9 : vector<8x128xf32>
    %114 = arith.negf %113 : vector<8x128xf32>
    %115 = math.exp %114 : vector<8x128xf32>
    %cst_34 = arith.constant 1.000000e+00 : f32
    %116 = vector.broadcast %cst_34 : f32 to vector<8x128xf32>
    %117 = arith.addf %116, %115 : vector<8x128xf32>
    %118 = arith.divf %116, %117 : vector<8x128xf32>
    %119 = math.tanh %113 : vector<8x128xf32>
    %120 = vector.extract_strided_slice %118 {offsets = [0, 0], sizes = [8, 32], strides = [1, 1]} : vector<8x128xf32> to vector<8x32xf32>
    %121 = vector.extract_strided_slice %118 {offsets = [0, 32], sizes = [8, 32], strides = [1, 1]} : vector<8x128xf32> to vector<8x32xf32>
    %122 = vector.extract_strided_slice %119 {offsets = [0, 64], sizes = [8, 32], strides = [1, 1]} : vector<8x128xf32> to vector<8x32xf32>
    %123 = vector.extract_strided_slice %118 {offsets = [0, 96], sizes = [8, 32], strides = [1, 1]} : vector<8x128xf32> to vector<8x32xf32>
    %124 = arith.mulf %121, %90 : vector<8x32xf32>
    %125 = arith.mulf %120, %122 : vector<8x32xf32>
    %126 = arith.addf %124, %125 : vector<8x32xf32>
    %127 = math.tanh %126 : vector<8x32xf32>
    %128 = arith.mulf %123, %127 : vector<8x32xf32>
    %129 = vector.extract_strided_slice %16 {offsets = [24, 0], sizes = [8, 128], strides = [1, 1]} : vector<72x128xf32> to vector<8x128xf32>
    %cst_35 = arith.constant dense<0.000000e+00> : vector<8x128xf32>
    %130 = tpu.matmul %110, %1, %cst_35 {dimension_numbers = #tpu.dot_dimension_numbers<[1], [0], [0], [1], [0, 0, 1, 1], [], []>} : vector<8x32xf32>, vector<32x128xf32>, vector<8x128xf32> -> vector<8x128xf32>
    %131 = arith.addf %129, %130 : vector<8x128xf32>
    %132 = arith.negf %131 : vector<8x128xf32>
    %133 = math.exp %132 : vector<8x128xf32>
    %cst_36 = arith.constant 1.000000e+00 : f32
    %134 = vector.broadcast %cst_36 : f32 to vector<8x128xf32>
    %135 = arith.addf %134, %133 : vector<8x128xf32>
    %136 = arith.divf %134, %135 : vector<8x128xf32>
    %137 = math.tanh %131 : vector<8x128xf32>
    %138 = vector.extract_strided_slice %136 {offsets = [0, 0], sizes = [8, 32], strides = [1, 1]} : vector<8x128xf32> to vector<8x32xf32>
    %139 = vector.extract_strided_slice %136 {offsets = [0, 32], sizes = [8, 32], strides = [1, 1]} : vector<8x128xf32> to vector<8x32xf32>
    %140 = vector.extract_strided_slice %137 {offsets = [0, 64], sizes = [8, 32], strides = [1, 1]} : vector<8x128xf32> to vector<8x32xf32>
    %141 = vector.extract_strided_slice %136 {offsets = [0, 96], sizes = [8, 32], strides = [1, 1]} : vector<8x128xf32> to vector<8x32xf32>
    %142 = arith.mulf %139, %108 : vector<8x32xf32>
    %143 = arith.mulf %138, %140 : vector<8x32xf32>
    %144 = arith.addf %142, %143 : vector<8x32xf32>
    %145 = math.tanh %144 : vector<8x32xf32>
    %146 = arith.mulf %141, %145 : vector<8x32xf32>
    %147 = tpu.concatenate %146, %128 in 1 : vector<8x32xf32>, vector<8x32xf32> -> vector<8x64xf32>
    %cst_37 = arith.constant dense<0.000000e+00> : vector<8x128xf32>
    %148 = tpu.matmul %147, %3, %cst_37 {dimension_numbers = #tpu.dot_dimension_numbers<[1], [0], [0], [1], [0, 0, 1, 1], [], []>} : vector<8x64xf32>, vector<64x128xf32>, vector<8x128xf32> -> vector<8x128xf32>
    %149 = arith.addf %148, %9 : vector<8x128xf32>
    %150 = arith.negf %149 : vector<8x128xf32>
    %151 = math.exp %150 : vector<8x128xf32>
    %cst_38 = arith.constant 1.000000e+00 : f32
    %152 = vector.broadcast %cst_38 : f32 to vector<8x128xf32>
    %153 = arith.addf %152, %151 : vector<8x128xf32>
    %154 = arith.divf %152, %153 : vector<8x128xf32>
    %155 = math.tanh %149 : vector<8x128xf32>
    %156 = vector.extract_strided_slice %154 {offsets = [0, 0], sizes = [8, 32], strides = [1, 1]} : vector<8x128xf32> to vector<8x32xf32>
    %157 = vector.extract_strided_slice %154 {offsets = [0, 32], sizes = [8, 32], strides = [1, 1]} : vector<8x128xf32> to vector<8x32xf32>
    %158 = vector.extract_strided_slice %155 {offsets = [0, 64], sizes = [8, 32], strides = [1, 1]} : vector<8x128xf32> to vector<8x32xf32>
    %159 = vector.extract_strided_slice %154 {offsets = [0, 96], sizes = [8, 32], strides = [1, 1]} : vector<8x128xf32> to vector<8x32xf32>
    %160 = arith.mulf %157, %126 : vector<8x32xf32>
    %161 = arith.mulf %156, %158 : vector<8x32xf32>
    %162 = arith.addf %160, %161 : vector<8x32xf32>
    %163 = math.tanh %162 : vector<8x32xf32>
    %164 = arith.mulf %159, %163 : vector<8x32xf32>
    %165 = vector.extract_strided_slice %16 {offsets = [32, 0], sizes = [8, 128], strides = [1, 1]} : vector<72x128xf32> to vector<8x128xf32>
    %cst_39 = arith.constant dense<0.000000e+00> : vector<8x128xf32>
    %166 = tpu.matmul %146, %1, %cst_39 {dimension_numbers = #tpu.dot_dimension_numbers<[1], [0], [0], [1], [0, 0, 1, 1], [], []>} : vector<8x32xf32>, vector<32x128xf32>, vector<8x128xf32> -> vector<8x128xf32>
    %167 = arith.addf %165, %166 : vector<8x128xf32>
    %168 = arith.negf %167 : vector<8x128xf32>
    %169 = math.exp %168 : vector<8x128xf32>
    %cst_40 = arith.constant 1.000000e+00 : f32
    %170 = vector.broadcast %cst_40 : f32 to vector<8x128xf32>
    %171 = arith.addf %170, %169 : vector<8x128xf32>
    %172 = arith.divf %170, %171 : vector<8x128xf32>
    %173 = math.tanh %167 : vector<8x128xf32>
    %174 = vector.extract_strided_slice %172 {offsets = [0, 0], sizes = [8, 32], strides = [1, 1]} : vector<8x128xf32> to vector<8x32xf32>
    %175 = vector.extract_strided_slice %172 {offsets = [0, 32], sizes = [8, 32], strides = [1, 1]} : vector<8x128xf32> to vector<8x32xf32>
    %176 = vector.extract_strided_slice %173 {offsets = [0, 64], sizes = [8, 32], strides = [1, 1]} : vector<8x128xf32> to vector<8x32xf32>
    %177 = vector.extract_strided_slice %172 {offsets = [0, 96], sizes = [8, 32], strides = [1, 1]} : vector<8x128xf32> to vector<8x32xf32>
    %178 = arith.mulf %175, %144 : vector<8x32xf32>
    %179 = arith.mulf %174, %176 : vector<8x32xf32>
    %180 = arith.addf %178, %179 : vector<8x32xf32>
    %181 = math.tanh %180 : vector<8x32xf32>
    %182 = arith.mulf %177, %181 : vector<8x32xf32>
    %183 = tpu.concatenate %182, %164 in 1 : vector<8x32xf32>, vector<8x32xf32> -> vector<8x64xf32>
    %cst_41 = arith.constant dense<0.000000e+00> : vector<8x128xf32>
    %184 = tpu.matmul %183, %3, %cst_41 {dimension_numbers = #tpu.dot_dimension_numbers<[1], [0], [0], [1], [0, 0, 1, 1], [], []>} : vector<8x64xf32>, vector<64x128xf32>, vector<8x128xf32> -> vector<8x128xf32>
    %185 = arith.addf %184, %9 : vector<8x128xf32>
    %186 = arith.negf %185 : vector<8x128xf32>
    %187 = math.exp %186 : vector<8x128xf32>
    %cst_42 = arith.constant 1.000000e+00 : f32
    %188 = vector.broadcast %cst_42 : f32 to vector<8x128xf32>
    %189 = arith.addf %188, %187 : vector<8x128xf32>
    %190 = arith.divf %188, %189 : vector<8x128xf32>
    %191 = math.tanh %185 : vector<8x128xf32>
    %192 = vector.extract_strided_slice %190 {offsets = [0, 0], sizes = [8, 32], strides = [1, 1]} : vector<8x128xf32> to vector<8x32xf32>
    %193 = vector.extract_strided_slice %190 {offsets = [0, 32], sizes = [8, 32], strides = [1, 1]} : vector<8x128xf32> to vector<8x32xf32>
    %194 = vector.extract_strided_slice %191 {offsets = [0, 64], sizes = [8, 32], strides = [1, 1]} : vector<8x128xf32> to vector<8x32xf32>
    %195 = vector.extract_strided_slice %190 {offsets = [0, 96], sizes = [8, 32], strides = [1, 1]} : vector<8x128xf32> to vector<8x32xf32>
    %196 = arith.mulf %193, %162 : vector<8x32xf32>
    %197 = arith.mulf %192, %194 : vector<8x32xf32>
    %198 = arith.addf %196, %197 : vector<8x32xf32>
    %199 = math.tanh %198 : vector<8x32xf32>
    %200 = arith.mulf %195, %199 : vector<8x32xf32>
    %201 = vector.extract_strided_slice %16 {offsets = [40, 0], sizes = [8, 128], strides = [1, 1]} : vector<72x128xf32> to vector<8x128xf32>
    %cst_43 = arith.constant dense<0.000000e+00> : vector<8x128xf32>
    %202 = tpu.matmul %182, %1, %cst_43 {dimension_numbers = #tpu.dot_dimension_numbers<[1], [0], [0], [1], [0, 0, 1, 1], [], []>} : vector<8x32xf32>, vector<32x128xf32>, vector<8x128xf32> -> vector<8x128xf32>
    %203 = arith.addf %201, %202 : vector<8x128xf32>
    %204 = arith.negf %203 : vector<8x128xf32>
    %205 = math.exp %204 : vector<8x128xf32>
    %cst_44 = arith.constant 1.000000e+00 : f32
    %206 = vector.broadcast %cst_44 : f32 to vector<8x128xf32>
    %207 = arith.addf %206, %205 : vector<8x128xf32>
    %208 = arith.divf %206, %207 : vector<8x128xf32>
    %209 = math.tanh %203 : vector<8x128xf32>
    %210 = vector.extract_strided_slice %208 {offsets = [0, 0], sizes = [8, 32], strides = [1, 1]} : vector<8x128xf32> to vector<8x32xf32>
    %211 = vector.extract_strided_slice %208 {offsets = [0, 32], sizes = [8, 32], strides = [1, 1]} : vector<8x128xf32> to vector<8x32xf32>
    %212 = vector.extract_strided_slice %209 {offsets = [0, 64], sizes = [8, 32], strides = [1, 1]} : vector<8x128xf32> to vector<8x32xf32>
    %213 = vector.extract_strided_slice %208 {offsets = [0, 96], sizes = [8, 32], strides = [1, 1]} : vector<8x128xf32> to vector<8x32xf32>
    %214 = arith.mulf %211, %180 : vector<8x32xf32>
    %215 = arith.mulf %210, %212 : vector<8x32xf32>
    %216 = arith.addf %214, %215 : vector<8x32xf32>
    %217 = math.tanh %216 : vector<8x32xf32>
    %218 = arith.mulf %213, %217 : vector<8x32xf32>
    %219 = tpu.concatenate %218, %200 in 1 : vector<8x32xf32>, vector<8x32xf32> -> vector<8x64xf32>
    %cst_45 = arith.constant dense<0.000000e+00> : vector<8x128xf32>
    %220 = tpu.matmul %219, %3, %cst_45 {dimension_numbers = #tpu.dot_dimension_numbers<[1], [0], [0], [1], [0, 0, 1, 1], [], []>} : vector<8x64xf32>, vector<64x128xf32>, vector<8x128xf32> -> vector<8x128xf32>
    %221 = arith.addf %220, %9 : vector<8x128xf32>
    %222 = arith.negf %221 : vector<8x128xf32>
    %223 = math.exp %222 : vector<8x128xf32>
    %cst_46 = arith.constant 1.000000e+00 : f32
    %224 = vector.broadcast %cst_46 : f32 to vector<8x128xf32>
    %225 = arith.addf %224, %223 : vector<8x128xf32>
    %226 = arith.divf %224, %225 : vector<8x128xf32>
    %227 = math.tanh %221 : vector<8x128xf32>
    %228 = vector.extract_strided_slice %226 {offsets = [0, 0], sizes = [8, 32], strides = [1, 1]} : vector<8x128xf32> to vector<8x32xf32>
    %229 = vector.extract_strided_slice %226 {offsets = [0, 32], sizes = [8, 32], strides = [1, 1]} : vector<8x128xf32> to vector<8x32xf32>
    %230 = vector.extract_strided_slice %227 {offsets = [0, 64], sizes = [8, 32], strides = [1, 1]} : vector<8x128xf32> to vector<8x32xf32>
    %231 = vector.extract_strided_slice %226 {offsets = [0, 96], sizes = [8, 32], strides = [1, 1]} : vector<8x128xf32> to vector<8x32xf32>
    %232 = arith.mulf %229, %198 : vector<8x32xf32>
    %233 = arith.mulf %228, %230 : vector<8x32xf32>
    %234 = arith.addf %232, %233 : vector<8x32xf32>
    %235 = math.tanh %234 : vector<8x32xf32>
    %236 = arith.mulf %231, %235 : vector<8x32xf32>
    %237 = vector.extract_strided_slice %16 {offsets = [48, 0], sizes = [8, 128], strides = [1, 1]} : vector<72x128xf32> to vector<8x128xf32>
    %cst_47 = arith.constant dense<0.000000e+00> : vector<8x128xf32>
    %238 = tpu.matmul %218, %1, %cst_47 {dimension_numbers = #tpu.dot_dimension_numbers<[1], [0], [0], [1], [0, 0, 1, 1], [], []>} : vector<8x32xf32>, vector<32x128xf32>, vector<8x128xf32> -> vector<8x128xf32>
    %239 = arith.addf %237, %238 : vector<8x128xf32>
    %240 = arith.negf %239 : vector<8x128xf32>
    %241 = math.exp %240 : vector<8x128xf32>
    %cst_48 = arith.constant 1.000000e+00 : f32
    %242 = vector.broadcast %cst_48 : f32 to vector<8x128xf32>
    %243 = arith.addf %242, %241 : vector<8x128xf32>
    %244 = arith.divf %242, %243 : vector<8x128xf32>
    %245 = math.tanh %239 : vector<8x128xf32>
    %246 = vector.extract_strided_slice %244 {offsets = [0, 0], sizes = [8, 32], strides = [1, 1]} : vector<8x128xf32> to vector<8x32xf32>
    %247 = vector.extract_strided_slice %244 {offsets = [0, 32], sizes = [8, 32], strides = [1, 1]} : vector<8x128xf32> to vector<8x32xf32>
    %248 = vector.extract_strided_slice %245 {offsets = [0, 64], sizes = [8, 32], strides = [1, 1]} : vector<8x128xf32> to vector<8x32xf32>
    %249 = vector.extract_strided_slice %244 {offsets = [0, 96], sizes = [8, 32], strides = [1, 1]} : vector<8x128xf32> to vector<8x32xf32>
    %250 = arith.mulf %247, %216 : vector<8x32xf32>
    %251 = arith.mulf %246, %248 : vector<8x32xf32>
    %252 = arith.addf %250, %251 : vector<8x32xf32>
    %253 = math.tanh %252 : vector<8x32xf32>
    %254 = arith.mulf %249, %253 : vector<8x32xf32>
    %255 = tpu.concatenate %254, %236 in 1 : vector<8x32xf32>, vector<8x32xf32> -> vector<8x64xf32>
    %cst_49 = arith.constant dense<0.000000e+00> : vector<8x128xf32>
    %256 = tpu.matmul %255, %3, %cst_49 {dimension_numbers = #tpu.dot_dimension_numbers<[1], [0], [0], [1], [0, 0, 1, 1], [], []>} : vector<8x64xf32>, vector<64x128xf32>, vector<8x128xf32> -> vector<8x128xf32>
    %257 = arith.addf %256, %9 : vector<8x128xf32>
    %258 = arith.negf %257 : vector<8x128xf32>
    %259 = math.exp %258 : vector<8x128xf32>
    %cst_50 = arith.constant 1.000000e+00 : f32
    %260 = vector.broadcast %cst_50 : f32 to vector<8x128xf32>
    %261 = arith.addf %260, %259 : vector<8x128xf32>
    %262 = arith.divf %260, %261 : vector<8x128xf32>
    %263 = math.tanh %257 : vector<8x128xf32>
    %264 = vector.extract_strided_slice %262 {offsets = [0, 0], sizes = [8, 32], strides = [1, 1]} : vector<8x128xf32> to vector<8x32xf32>
    %265 = vector.extract_strided_slice %262 {offsets = [0, 32], sizes = [8, 32], strides = [1, 1]} : vector<8x128xf32> to vector<8x32xf32>
    %266 = vector.extract_strided_slice %263 {offsets = [0, 64], sizes = [8, 32], strides = [1, 1]} : vector<8x128xf32> to vector<8x32xf32>
    %267 = vector.extract_strided_slice %262 {offsets = [0, 96], sizes = [8, 32], strides = [1, 1]} : vector<8x128xf32> to vector<8x32xf32>
    %268 = arith.mulf %265, %234 : vector<8x32xf32>
    %269 = arith.mulf %264, %266 : vector<8x32xf32>
    %270 = arith.addf %268, %269 : vector<8x32xf32>
    %271 = math.tanh %270 : vector<8x32xf32>
    %272 = arith.mulf %267, %271 : vector<8x32xf32>
    %273 = vector.extract_strided_slice %16 {offsets = [56, 0], sizes = [8, 128], strides = [1, 1]} : vector<72x128xf32> to vector<8x128xf32>
    %cst_51 = arith.constant dense<0.000000e+00> : vector<8x128xf32>
    %274 = tpu.matmul %254, %1, %cst_51 {dimension_numbers = #tpu.dot_dimension_numbers<[1], [0], [0], [1], [0, 0, 1, 1], [], []>} : vector<8x32xf32>, vector<32x128xf32>, vector<8x128xf32> -> vector<8x128xf32>
    %275 = arith.addf %273, %274 : vector<8x128xf32>
    %276 = arith.negf %275 : vector<8x128xf32>
    %277 = math.exp %276 : vector<8x128xf32>
    %cst_52 = arith.constant 1.000000e+00 : f32
    %278 = vector.broadcast %cst_52 : f32 to vector<8x128xf32>
    %279 = arith.addf %278, %277 : vector<8x128xf32>
    %280 = arith.divf %278, %279 : vector<8x128xf32>
    %281 = math.tanh %275 : vector<8x128xf32>
    %282 = vector.extract_strided_slice %280 {offsets = [0, 0], sizes = [8, 32], strides = [1, 1]} : vector<8x128xf32> to vector<8x32xf32>
    %283 = vector.extract_strided_slice %280 {offsets = [0, 32], sizes = [8, 32], strides = [1, 1]} : vector<8x128xf32> to vector<8x32xf32>
    %284 = vector.extract_strided_slice %281 {offsets = [0, 64], sizes = [8, 32], strides = [1, 1]} : vector<8x128xf32> to vector<8x32xf32>
    %285 = vector.extract_strided_slice %280 {offsets = [0, 96], sizes = [8, 32], strides = [1, 1]} : vector<8x128xf32> to vector<8x32xf32>
    %286 = arith.mulf %283, %252 : vector<8x32xf32>
    %287 = arith.mulf %282, %284 : vector<8x32xf32>
    %288 = arith.addf %286, %287 : vector<8x32xf32>
    %289 = math.tanh %288 : vector<8x32xf32>
    %290 = arith.mulf %285, %289 : vector<8x32xf32>
    %291 = tpu.concatenate %290, %272 in 1 : vector<8x32xf32>, vector<8x32xf32> -> vector<8x64xf32>
    %cst_53 = arith.constant dense<0.000000e+00> : vector<8x128xf32>
    %292 = tpu.matmul %291, %3, %cst_53 {dimension_numbers = #tpu.dot_dimension_numbers<[1], [0], [0], [1], [0, 0, 1, 1], [], []>} : vector<8x64xf32>, vector<64x128xf32>, vector<8x128xf32> -> vector<8x128xf32>
    %293 = arith.addf %292, %9 : vector<8x128xf32>
    %294 = arith.negf %293 : vector<8x128xf32>
    %295 = math.exp %294 : vector<8x128xf32>
    %cst_54 = arith.constant 1.000000e+00 : f32
    %296 = vector.broadcast %cst_54 : f32 to vector<8x128xf32>
    %297 = arith.addf %296, %295 : vector<8x128xf32>
    %298 = arith.divf %296, %297 : vector<8x128xf32>
    %299 = math.tanh %293 : vector<8x128xf32>
    %300 = vector.extract_strided_slice %298 {offsets = [0, 0], sizes = [8, 32], strides = [1, 1]} : vector<8x128xf32> to vector<8x32xf32>
    %301 = vector.extract_strided_slice %298 {offsets = [0, 32], sizes = [8, 32], strides = [1, 1]} : vector<8x128xf32> to vector<8x32xf32>
    %302 = vector.extract_strided_slice %299 {offsets = [0, 64], sizes = [8, 32], strides = [1, 1]} : vector<8x128xf32> to vector<8x32xf32>
    %303 = vector.extract_strided_slice %298 {offsets = [0, 96], sizes = [8, 32], strides = [1, 1]} : vector<8x128xf32> to vector<8x32xf32>
    %304 = arith.mulf %301, %270 : vector<8x32xf32>
    %305 = arith.mulf %300, %302 : vector<8x32xf32>
    %306 = arith.addf %304, %305 : vector<8x32xf32>
    %307 = math.tanh %306 : vector<8x32xf32>
    %308 = arith.mulf %303, %307 : vector<8x32xf32>
    %309 = vector.extract_strided_slice %16 {offsets = [64, 0], sizes = [8, 128], strides = [1, 1]} : vector<72x128xf32> to vector<8x128xf32>
    %cst_55 = arith.constant dense<0.000000e+00> : vector<8x128xf32>
    %310 = tpu.matmul %290, %1, %cst_55 {dimension_numbers = #tpu.dot_dimension_numbers<[1], [0], [0], [1], [0, 0, 1, 1], [], []>} : vector<8x32xf32>, vector<32x128xf32>, vector<8x128xf32> -> vector<8x128xf32>
    %311 = arith.addf %309, %310 : vector<8x128xf32>
    %312 = arith.negf %311 : vector<8x128xf32>
    %313 = math.exp %312 : vector<8x128xf32>
    %cst_56 = arith.constant 1.000000e+00 : f32
    %314 = vector.broadcast %cst_56 : f32 to vector<8x128xf32>
    %315 = arith.addf %314, %313 : vector<8x128xf32>
    %316 = arith.divf %314, %315 : vector<8x128xf32>
    %317 = math.tanh %311 : vector<8x128xf32>
    %318 = vector.extract_strided_slice %316 {offsets = [0, 0], sizes = [8, 32], strides = [1, 1]} : vector<8x128xf32> to vector<8x32xf32>
    %319 = vector.extract_strided_slice %316 {offsets = [0, 32], sizes = [8, 32], strides = [1, 1]} : vector<8x128xf32> to vector<8x32xf32>
    %320 = vector.extract_strided_slice %317 {offsets = [0, 64], sizes = [8, 32], strides = [1, 1]} : vector<8x128xf32> to vector<8x32xf32>
    %321 = vector.extract_strided_slice %316 {offsets = [0, 96], sizes = [8, 32], strides = [1, 1]} : vector<8x128xf32> to vector<8x32xf32>
    %322 = arith.mulf %319, %288 : vector<8x32xf32>
    %323 = arith.mulf %318, %320 : vector<8x32xf32>
    %324 = arith.addf %322, %323 : vector<8x32xf32>
    %325 = math.tanh %324 : vector<8x32xf32>
    %326 = arith.mulf %321, %325 : vector<8x32xf32>
    %327 = tpu.concatenate %326, %308 in 1 : vector<8x32xf32>, vector<8x32xf32> -> vector<8x64xf32>
    %cst_57 = arith.constant dense<0.000000e+00> : vector<8x128xf32>
    %328 = tpu.matmul %327, %3, %cst_57 {dimension_numbers = #tpu.dot_dimension_numbers<[1], [0], [0], [1], [0, 0, 1, 1], [], []>} : vector<8x64xf32>, vector<64x128xf32>, vector<8x128xf32> -> vector<8x128xf32>
    %329 = arith.addf %328, %9 : vector<8x128xf32>
    %330 = arith.negf %329 : vector<8x128xf32>
    %331 = math.exp %330 : vector<8x128xf32>
    %cst_58 = arith.constant 1.000000e+00 : f32
    %332 = vector.broadcast %cst_58 : f32 to vector<8x128xf32>
    %333 = arith.addf %332, %331 : vector<8x128xf32>
    %334 = arith.divf %332, %333 : vector<8x128xf32>
    %335 = math.tanh %329 : vector<8x128xf32>
    %336 = vector.extract_strided_slice %334 {offsets = [0, 0], sizes = [8, 32], strides = [1, 1]} : vector<8x128xf32> to vector<8x32xf32>
    %337 = vector.extract_strided_slice %334 {offsets = [0, 32], sizes = [8, 32], strides = [1, 1]} : vector<8x128xf32> to vector<8x32xf32>
    %338 = vector.extract_strided_slice %335 {offsets = [0, 64], sizes = [8, 32], strides = [1, 1]} : vector<8x128xf32> to vector<8x32xf32>
    %339 = vector.extract_strided_slice %334 {offsets = [0, 96], sizes = [8, 32], strides = [1, 1]} : vector<8x128xf32> to vector<8x32xf32>
    %340 = arith.mulf %337, %306 : vector<8x32xf32>
    %341 = arith.mulf %336, %338 : vector<8x32xf32>
    %342 = arith.addf %340, %341 : vector<8x32xf32>
    %343 = math.tanh %342 : vector<8x32xf32>
    %344 = arith.mulf %339, %343 : vector<8x32xf32>
    %345 = tpu.concatenate %56, %92, %128, %164, %200, %236, %272, %308, %344 in 0 : vector<8x32xf32>, vector<8x32xf32>, vector<8x32xf32>, vector<8x32xf32>, vector<8x32xf32>, vector<8x32xf32>, vector<8x32xf32>, vector<8x32xf32>, vector<8x32xf32> -> vector<72x32xf32>
    %cst_59 = arith.constant dense<0.000000e+00> : vector<24x32xf32>
    %346 = tpu.matmul %12, %345, %cst_59 {dimension_numbers = #tpu.dot_dimension_numbers<[1], [0], [0], [1], [0, 0, 1, 1], [], []>} : vector<24x72xf32>, vector<72x32xf32>, vector<24x32xf32> -> vector<24x32xf32>
    %cst_60 = arith.constant dense<0.000000e+00> : vector<24x128xf32>
    %347 = tpu.matmul %346, %10, %cst_60 {dimension_numbers = #tpu.dot_dimension_numbers<[1], [0], [0], [1], [0, 0, 1, 1], [], []>} : vector<24x32xf32>, vector<32x128xf32>, vector<24x128xf32> -> vector<24x128xf32>
    %348 = vector.broadcast %11 : vector<1x128xf32> to vector<24x128xf32>
    %349 = arith.addf %347, %348 : vector<24x128xf32>
    %c0_61 = arith.constant 0 : index
    %c0_62 = arith.constant 0 : index
    %350 = vector.load %arg9[%c0_61, %c0_62] : memref<24x128xf32, #tpu.memory_space<vmem>>, vector<24x128xf32>
    tpu.vector_store %arg9[%c0_61, %c0_62], %349 {strides = array<i32>} : memref<24x128xf32, #tpu.memory_space<vmem>>, vector<24x128xf32>,
    return
  }
  func.func @transform_0(%arg0: i32) -> (i32, i32) {
    %c0_i32 = arith.constant 0 : i32
    %c0_i32_0 = arith.constant 0 : i32
    %c0_i32_1 = arith.constant 0 : i32
    return %c0_i32, %c0_i32_0 : i32, i32
  }
  func.func @transform_1(%arg0: i32) -> (i32, i32) {
    %c0_i32 = arith.constant 0 : i32
    %c0_i32_0 = arith.constant 0 : i32
    %c0_i32_1 = arith.constant 0 : i32
    return %c0_i32, %c0_i32_0 : i32, i32
  }
  func.func @transform_2(%arg0: i32) -> (i32, i32) {
    %c0_i32 = arith.constant 0 : i32
    %c0_i32_0 = arith.constant 0 : i32
    %c0_i32_1 = arith.constant 0 : i32
    return %c0_i32, %c0_i32_0 : i32, i32
  }
  func.func @transform_3(%arg0: i32) -> (i32, i32, i32) {
    %c0_i32 = arith.constant 0 : i32
    %c0_i32_0 = arith.constant 0 : i32
    %c0_i32_1 = arith.constant 0 : i32
    %c0_i32_2 = arith.constant 0 : i32
    return %c0_i32, %c0_i32_0, %c0_i32_1 : i32, i32, i32
  }
  func.func @transform_4(%arg0: i32) -> (i32, i32, i32) {
    %c0_i32 = arith.constant 0 : i32
    %c0_i32_0 = arith.constant 0 : i32
    %c0_i32_1 = arith.constant 0 : i32
    %c0_i32_2 = arith.constant 0 : i32
    return %c0_i32, %c0_i32_0, %c0_i32_1 : i32, i32, i32
  }
  func.func @transform_5(%arg0: i32) -> (i32, i32) {
    %c0_i32 = arith.constant 0 : i32
    %c0_i32_0 = arith.constant 0 : i32
    %c0_i32_1 = arith.constant 0 : i32
    return %c0_i32, %c0_i32_0 : i32, i32
  }
  func.func @transform_6(%arg0: i32) -> (i32, i32) {
    %c0_i32 = arith.constant 0 : i32
    %c0_i32_0 = arith.constant 0 : i32
    %c0_i32_1 = arith.constant 0 : i32
    return %c0_i32, %c0_i32_0 : i32, i32
  }
  func.func @transform_7(%arg0: i32) -> (i32, i32) {
    %c0_i32 = arith.constant 0 : i32
    %c0_i32_0 = arith.constant 0 : i32
    %c0_i32_1 = arith.constant 0 : i32
    return %c0_i32, %c0_i32_0 : i32, i32
  }
  func.func @transform_8(%arg0: i32) -> (i32, i32) {
    %c0_i32 = arith.constant 0 : i32
    %c0_i32_0 = arith.constant 0 : i32
    %c0_i32_1 = arith.constant 0 : i32
    return %c0_i32, %c0_i32_0 : i32, i32
  }
}

</mosaic_0001>

<llo_original>
// kernel: tpu_custom_call.1
$region0: #{tpu_custom_call.1}
  #allocation0 [shape = 'u32[]', space=smem, size = 0x4, offset = 0x4, fixed_abs, tag = 'smem constant byte address 0x4 - core index']
  #allocation1 [shape = 'u32[144,128]{1,0:T(1,128)}', space=vmem, size = 0x12000, scoped, tag = 'internal scratch']
  %s0 = inlined_call_operand.vmem [shape: f32[72,32], index: 0, kind: input, shape index: {}]
  %s1 = inlined_call_operand.vmem [shape: f32[32,128], index: 1, kind: input, shape index: {}]
  %s2 = inlined_call_operand.hbm [shape: f32[32,128], index: 2, kind: input, shape index: {}]
  %s3 = inlined_call_operand.vmem [shape: f32[1,64,128], index: 3, kind: input, shape index: {}]
  %s4 = inlined_call_operand.vmem [shape: f32[2,1,128], index: 4, kind: input, shape index: {}]
  %s5 = inlined_call_operand.vmem [shape: f32[24,72], index: 5, kind: input, shape index: {}]
  %s6 = inlined_call_operand.hbm [shape: f32[32,128], index: 6, kind: input, shape index: {}]
  %s7 = inlined_call_operand.vmem [shape: f32[1,128], index: 7, kind: input, shape index: {}]
  %s8 = inlined_call_operand.hbm [shape: f32[24,128], index: 8, kind: output, shape index: {}]
  %s9 = sld [smem:[#allocation0]]
  $region50: #{tpu_custom_call.1} parent=0
    _
  %s11 = ssub.s32 1, %s9
  %s12 = scalar_select 0, %s11, %s9
  $region1: #{tpu_custom_call.1} parent=0
    #allocation2 [shape = 'u8[16384]{0}', space=vmem, size = 0x4000, scoped, tag = 'input window, operand 2, single buffered']
    #allocation3 [shape = 's32[1]{0}', space=sflag, size = 0x4, scoped, tag = 'scoped memory for tpu_custom_call.1']
    #allocation4 [shape = 's32[1]{0}', space=sflag, size = 0x4, scoped, tag = 'scoped memory for tpu_custom_call.1']
    #allocation5 [shape = 'u8[16384]{0}', space=vmem, size = 0x4000, scoped, tag = 'input window, operand 6, single buffered']
    #allocation6 [shape = 's32[1]{0}', space=sflag, size = 0x4, scoped, tag = 'scoped memory for tpu_custom_call.1']
    #allocation7 [shape = 'u8[12288]{0}', space=vmem, size = 0x3000, scoped, tag = 'output window, operand 0, single buffered']
    %13 = vsyncpa [#allocation3], 0
    %14 = vsyncpa [#allocation6], 0
    %15 = vsyncpa [#allocation4], 0
    // Predicated region
    $region2: #{tpu_custom_call.1} parent=1 // pred_check
      _
    $region3: #{tpu_custom_call.1} parent=1 // pred_check_branch
      %17 = sbr.rel (0) target = $region5
    $region4: #{tpu_custom_call.1} parent=1 // pred_region
      _
    $region5: #{tpu_custom_call.1} parent=1 // pred_fallthru
      _
    // Predicated region
    $region6: #{tpu_custom_call.1} parent=1 // pred_check
      _
    $region7: #{tpu_custom_call.1} parent=1 // pred_check_branch
      %19 = sbr.rel (0) target = $region9
    $region8: #{tpu_custom_call.1} parent=1 // pred_region
      _
    $region9: #{tpu_custom_call.1} parent=1 // pred_fallthru
      _
    // Predicated region
    $region10: #{tpu_custom_call.1} parent=1 // pred_check
      _
    $region11: #{tpu_custom_call.1} parent=1 // pred_check_branch
      %21 = sbr.rel (0) target = $region13
    $region12: #{tpu_custom_call.1} parent=1 // pred_region
      %s23 = ssub.s32 512, 512
      %24 = vsyncadd [#allocation3], %s23
      %s25 = sshll.u32 [#allocation2], 4
      %s26 = int_to_ptr.vmem [resolvable:$true] %s25
      %31 = dma.hbm_to_vmem [thread:$0]  %s2, 512, %s26, [#allocation3], 128, 128, 8
    $region13: #{tpu_custom_call.1} parent=1 // pred_fallthru
      _
    // Predicated region
    $region14: #{tpu_custom_call.1} parent=1 // pred_check
      _
    $region15: #{tpu_custom_call.1} parent=1 // pred_check_branch
      %33 = sbr.rel (0) target = $region17
    $region16: #{tpu_custom_call.1} parent=1 // pred_region
      _
    $region17: #{tpu_custom_call.1} parent=1 // pred_fallthru
      _
    // Predicated region
    $region18: #{tpu_custom_call.1} parent=1 // pred_check
      _
    $region19: #{tpu_custom_call.1} parent=1 // pred_check_branch
      %35 = sbr.rel (0) target = $region21
    $region20: #{tpu_custom_call.1} parent=1 // pred_region
      _
    $region21: #{tpu_custom_call.1} parent=1 // pred_fallthru
      _
    // Predicated region
    $region22: #{tpu_custom_call.1} parent=1 // pred_check
      _
    $region23: #{tpu_custom_call.1} parent=1 // pred_check_branch
      %37 = sbr.rel (0) target = $region25
    $region24: #{tpu_custom_call.1} parent=1 // pred_region
      _
    $region25: #{tpu_custom_call.1} parent=1 // pred_fallthru
      _
    // Predicated region
    $region26: #{tpu_custom_call.1} parent=1 // pred_check
      _
    $region27: #{tpu_custom_call.1} parent=1 // pred_check_branch
      %39 = sbr.rel (0) target = $region29
    $region28: #{tpu_custom_call.1} parent=1 // pred_region
      %s41 = ssub.s32 512, 512
      %42 = vsyncadd [#allocation6], %s41
      %s43 = sshll.u32 [#allocation5], 4
      %s44 = int_to_ptr.vmem [resolvable:$true] %s43
      %49 = dma.hbm_to_vmem [thread:$0]  %s6, 512, %s44, [#allocation6], 128, 128, 8
    $region29: #{tpu_custom_call.1} parent=1 // pred_fallthru
      _
    // Predicated region
    $region30: #{tpu_custom_call.1} parent=1 // pred_check
      _
    $region31: #{tpu_custom_call.1} parent=1 // pred_check_branch
      %51 = sbr.rel (0) target = $region33
    $region32: #{tpu_custom_call.1} parent=1 // pred_region
      _
    $region33: #{tpu_custom_call.1} parent=1 // pred_fallthru
      _
    // Predicated region
    $region34: #{tpu_custom_call.1} parent=1 // pred_check
      _
    $region35: #{tpu_custom_call.1} parent=1 // pred_check_branch
      %53 = sbr.rel (0) target = $region37
    $region36: #{tpu_custom_call.1} parent=1 // pred_region
      %54 = dma.done [#allocation3], 512
    $region37: #{tpu_custom_call.1} parent=1 // pred_fallthru
      _
    // Predicated region
    $region38: #{tpu_custom_call.1} parent=1 // pred_check
      _
    $region39: #{tpu_custom_call.1} parent=1 // pred_check_branch
      %56 = sbr.rel (0) target = $region41
    $region40: #{tpu_custom_call.1} parent=1 // pred_region
      %57 = dma.done [#allocation6], 512
    $region41: #{tpu_custom_call.1} parent=1 // pred_fallthru
      _
    %v58 = vld [vmem:[%s1] sm:$0xff]
    %v59 = vld [vmem:[%s1 + $0x8] sm:$0xff]
    %v60 = vld [vmem:[%s1 + $0x10] sm:$0xff]
    %v61 = vld [vmem:[%s1 + $0x18] sm:$0xff]
    %v62 = vld [vmem:[#allocation2] sm:$0xff]
    %v63 = vld [vmem:[#allocation2 + $0x8] sm:$0xff]
    %v64 = vld [vmem:[#allocation2 + $0x10] sm:$0xff]
    %v65 = vld [vmem:[#allocation2 + $0x18] sm:$0xff]
    %v66 = vld [vmem:[%s3] sm:$0xff]
    %v67 = vld [vmem:[%s3 + $0x8] sm:$0xff]
    %v68 = vld [vmem:[%s3 + $0x10] sm:$0xff]
    %v69 = vld [vmem:[%s3 + $0x18] sm:$0xff]
    %v70 = vld [vmem:[%s3 + $0x20] sm:$0xff]
    %v71 = vld [vmem:[%s3 + $0x28] sm:$0xff]
    %v72 = vld [vmem:[%s3 + $0x30] sm:$0xff]
    %v73 = vld [vmem:[%s3 + $0x38] sm:$0xff]
    %v74 = vld [vmem:[%s4] sm:$0x1]
    %s75 = scalar_lea.vmem %s4, 1
    %v76 = vld [vmem:[%s75] sm:$0x1]
    %v78 = vlaneseq
    %v79 = vshrl.u32 %v78, 7
    %v80 = vsub.s32 0, %v79
    %v81 = vrot.slane %v76, %v80
    %v83 = vld [vmem:[#allocation5] sm:$0xff]
    %v84 = vld [vmem:[#allocation5 + $0x8] sm:$0xff]
    %v85 = vld [vmem:[#allocation5 + $0x10] sm:$0xff]
    %v86 = vld [vmem:[#allocation5 + $0x18] sm:$0xff]
    %v87 = vld [vmem:[%s7] sm:$0x1]
    %v88 = vld [vmem:[%s5] sm:$0xff]
    %v89 = vld [vmem:[%s5 + $0x8] sm:$0xff]
    %v90 = vld [vmem:[%s5 + $0x10] sm:$0xff]
    %v91 = vld [vmem:[%s0] sm:$0xff]
    %v92 = vld [vmem:[%s0 + $0x8] sm:$0xff]
    %v93 = vld [vmem:[%s0 + $0x10] sm:$0xff]
    %v94 = vld [vmem:[%s0 + $0x18] sm:$0xff]
    %v95 = vld [vmem:[%s0 + $0x20] sm:$0xff]
    %v96 = vld [vmem:[%s0 + $0x28] sm:$0xff]
    %v97 = vld [vmem:[%s0 + $0x30] sm:$0xff]
    %v98 = vld [vmem:[%s0 + $0x38] sm:$0xff]
    %v99 = vld [vmem:[%s0 + $0x40] sm:$0xff]
    %v101 = vlaneseq
    %v102 = vshrl.u32 %v101, 7
    %v103 = vsub.s32 0, %v102
    %v104 = vrot.slane %v74, %v103
    %vm106 = vcmask 261120
    %v108 = vsel %vm106, %v91, 0
    %v111 = vsel %vm106, %v92, 0
    %v114 = vsel %vm106, %v93, 0
    %v117 = vsel %vm106, %v94, 0
    %v120 = vsel %vm106, %v95, 0
    %v123 = vsel %vm106, %v96, 0
    %v126 = vsel %vm106, %v97, 0
    %v129 = vsel %vm106, %v98, 0
    %v132 = vsel %vm106, %v99, 0
    %134 = vmatprep.subr.mxu0 0.0
    %135 = vmatpush1.msra.mxu0 %v58
    %136 = vmatprep.subr.mxu0 0.0
    %137 = vmatpush1.msra.mxu0 %v59
    %138 = vmatprep.subr.mxu0 0.0
    %139 = vmatpush1.msra.mxu0 %v60
    %140 = vmatprep.subr.mxu0 0.0
    %141 = vmatpush1.msra.mxu0 %v61
    %142 = vmatprep.subr.mxu0 0.0
    %143 = vmatpush1.msra.mxu0 0.0
    %144 = vmatprep.subr.mxu0 0.0
    %145 = vmatpush1.msra.mxu0 0.0
    %146 = vmatprep.subr.mxu0 0.0
    %147 = vmatpush1.msra.mxu0 0.0
    %148 = vmatprep.subr.mxu0 0.0
    %149 = vmatpush1.msra.mxu0 0.0
    %150 = vmatprep.subr.mxu0 0.0
    %151 = vmatpush1.msra.mxu0 0.0
    %152 = vmatprep.subr.mxu0 0.0
    %153 = vmatpush1.msra.mxu0 0.0
    %154 = vmatprep.subr.mxu0 0.0
    %155 = vmatpush1.msra.mxu0 0.0
    %156 = vmatprep.subr.mxu0 0.0
    %157 = vmatpush1.msra.mxu0 0.0
    %158 = vmatprep.subr.mxu0 0.0
    %159 = vmatpush1.msra.mxu0 0.0
    %160 = vmatprep.subr.mxu0 0.0
    %161 = vmatpush1.msra.mxu0 0.0
    %162 = vmatprep.subr.mxu0 0.0
    %163 = vmatpush1.msra.mxu0 0.0
    %164 = vmatprep.subr.mxu0 0.0
    %165 = vmatpush1.msra.mxu0 0.0
    %166 = vmatprep.subr.mxu0 0.0
    %167 = vmatpush1.msra.mxu0 0.0
    %168 = vmatprep.subr.mxu0 0.0
    %169 = vmatpush1.msra.mxu0 0.0
    %170 = vmatprep.subr.mxu0 0.0
    %171 = vmatpush1.msra.mxu0 0.0
    %172 = vmatprep.subr.mxu0 0.0
    %173 = vmatpush1.msra.mxu0 0.0
    %174 = vmatprep.subr.mxu0 0.0
    %175 = vmatpush1.msra.mxu0 0.0
    %176 = vmatprep.subr.mxu0 0.0
    %177 = vmatpush1.msra.mxu0 0.0
    %178 = vmatprep.subr.mxu0 0.0
    %179 = vmatpush1.msra.mxu0 0.0
    %180 = vmatprep.subr.mxu0 0.0
    %181 = vmatpush1.msra.mxu0 0.0
    %182 = vmatprep.subr.mxu0 0.0
    %183 = vmatpush1.msra.mxu0 0.0
    %184 = vmatprep.subr.mxu0 0.0
    %185 = vmatpush1.msra.mxu0 0.0
    %186 = vmatprep.subr.mxu0 0.0
    %187 = vmatpush1.msra.mxu0 0.0
    %188 = vmatprep.subr.mxu0 0.0
    %189 = vmatpush1.msra.mxu0 0.0
    %190 = vmatprep.subr.mxu0 0.0
    %191 = vmatpush1.msra.mxu0 0.0
    %192 = vmatprep.subr.mxu0 0.0
    %193 = vmatpush1.msra.mxu0 0.0
    %194 = vmatprep.subr.mxu0 0.0
    %195 = vmatpush1.msra.mxu0 0.0
    %196 = vmatprep.subr.mxu0 0.0
    %197 = vmatpush1.msra.mxu0 0.0
    %198 = vmatprep.mubr.f32.mxu0 0.0
    %199 = vmatmul.mubr.f32.gmra.mrb[0].mxu0 %v108
    %v200 = vpop.f32.mrb[0].mxu0
    %v201 = vadd.f32 %v104, %v200
    %v202 = vpop.f32.mrb[0].mxu0
    %203 = vmatprep.mubr.f32.mxu0 0.0
    %204 = vmatmul.mubr.f32.gmra.mrb[0].mxu0 %v111
    %v205 = vpop.f32.mrb[0].mxu0
    %v206 = vadd.f32 %v104, %v205
    %v207 = vpop.f32.mrb[0].mxu0
    %208 = vmatprep.mubr.f32.mxu0 0.0
    %209 = vmatmul.mubr.f32.gmra.mrb[0].mxu0 %v114
    %v210 = vpop.f32.mrb[0].mxu0
    %v211 = vadd.f32 %v104, %v210
    %v212 = vpop.f32.mrb[0].mxu0
    %213 = vmatprep.mubr.f32.mxu0 0.0
    %214 = vmatmul.mubr.f32.gmra.mrb[0].mxu0 %v117
    %v215 = vpop.f32.mrb[0].mxu0
    %v216 = vadd.f32 %v104, %v215
    %v217 = vpop.f32.mrb[0].mxu0
    %218 = vmatprep.mubr.f32.mxu0 0.0
    %219 = vmatmul.mubr.f32.gmra.mrb[0].mxu0 %v120
    %v220 = vpop.f32.mrb[0].mxu0
    %v221 = vadd.f32 %v104, %v220
    %v222 = vpop.f32.mrb[0].mxu0
    %223 = vmatprep.mubr.f32.mxu0 0.0
    %224 = vmatmul.mubr.f32.gmra.mrb[0].mxu0 %v123
    %v225 = vpop.f32.mrb[0].mxu0
    %v226 = vadd.f32 %v104, %v225
    %v227 = vpop.f32.mrb[0].mxu0
    %228 = vmatprep.mubr.f32.mxu0 0.0
    %229 = vmatmul.mubr.f32.gmra.mrb[0].mxu0 %v126
    %v230 = vpop.f32.mrb[0].mxu0
    %v231 = vadd.f32 %v104, %v230
    %v232 = vpop.f32.mrb[0].mxu0
    %233 = vmatprep.mubr.f32.mxu0 0.0
    %234 = vmatmul.mubr.f32.gmra.mrb[0].mxu0 %v129
    %v235 = vpop.f32.mrb[0].mxu0
    %v236 = vadd.f32 %v104, %v235
    %v237 = vpop.f32.mrb[0].mxu0
    %238 = vmatprep.mubr.f32.mxu0 0.0
    %239 = vmatmul.mubr.f32.gmra.mrb[0].mxu0 %v132
    %v240 = vpop.f32.mrb[0].mxu0
    %v241 = vadd.f32 %v104, %v240
    %v242 = vpop.f32.mrb[0].mxu0
    %243 = vdwg.mxu0
    %v245 = vsel %vm106, 0.0, 0
    %247 = vmatprep.subr.mxu0 0.0
    %248 = vmatpush1.msra.mxu0 %v62
    %249 = vmatprep.subr.mxu0 0.0
    %250 = vmatpush1.msra.mxu0 %v63
    %251 = vmatprep.subr.mxu0 0.0
    %252 = vmatpush1.msra.mxu0 %v64
    %253 = vmatprep.subr.mxu0 0.0
    %254 = vmatpush1.msra.mxu0 %v65
    %255 = vmatprep.subr.mxu0 0.0
    %256 = vmatpush1.msra.mxu0 0.0
    %257 = vmatprep.subr.mxu0 0.0
    %258 = vmatpush1.msra.mxu0 0.0
    %259 = vmatprep.subr.mxu0 0.0
    %260 = vmatpush1.msra.mxu0 0.0
    %261 = vmatprep.subr.mxu0 0.0
    %262 = vmatpush1.msra.mxu0 0.0
    %263 = vmatprep.subr.mxu0 0.0
    %264 = vmatpush1.msra.mxu0 0.0
    %265 = vmatprep.subr.mxu0 0.0
    %266 = vmatpush1.msra.mxu0 0.0
    %267 = vmatprep.subr.mxu0 0.0
    %268 = vmatpush1.msra.mxu0 0.0
    %269 = vmatprep.subr.mxu0 0.0
    %270 = vmatpush1.msra.mxu0 0.0
    %271 = vmatprep.subr.mxu0 0.0
    %272 = vmatpush1.msra.mxu0 0.0
    %273 = vmatprep.subr.mxu0 0.0
    %274 = vmatpush1.msra.mxu0 0.0
    %275 = vmatprep.subr.mxu0 0.0
    %276 = vmatpush1.msra.mxu0 0.0
    %277 = vmatprep.subr.mxu0 0.0
    %278 = vmatpush1.msra.mxu0 0.0
    %279 = vmatprep.subr.mxu0 0.0
    %280 = vmatpush1.msra.mxu0 0.0
    %281 = vmatprep.subr.mxu0 0.0
    %282 = vmatpush1.msra.mxu0 0.0
    %283 = vmatprep.subr.mxu0 0.0
    %284 = vmatpush1.msra.mxu0 0.0
    %285 = vmatprep.subr.mxu0 0.0
    %286 = vmatpush1.msra.mxu0 0.0
    %287 = vmatprep.subr.mxu0 0.0
    %288 = vmatpush1.msra.mxu0 0.0
    %289 = vmatprep.subr.mxu0 0.0
    %290 = vmatpush1.msra.mxu0 0.0
    %291 = vmatprep.subr.mxu0 0.0
    %292 = vmatpush1.msra.mxu0 0.0
    %293 = vmatprep.subr.mxu0 0.0
    %294 = vmatpush1.msra.mxu0 0.0
    %295 = vmatprep.subr.mxu0 0.0
    %296 = vmatpush1.msra.mxu0 0.0
    %297 = vmatprep.subr.mxu0 0.0
    %298 = vmatpush1.msra.mxu0 0.0
    %299 = vmatprep.subr.mxu0 0.0
    %300 = vmatpush1.msra.mxu0 0.0
    %301 = vmatprep.subr.mxu0 0.0
    %302 = vmatpush1.msra.mxu0 0.0
    %303 = vmatprep.subr.mxu0 0.0
    %304 = vmatpush1.msra.mxu0 0.0
    %305 = vmatprep.subr.mxu0 0.0
    %306 = vmatpush1.msra.mxu0 0.0
    %307 = vmatprep.subr.mxu0 0.0
    %308 = vmatpush1.msra.mxu0 0.0
    %309 = vmatprep.subr.mxu0 0.0
    %310 = vmatpush1.msra.mxu0 0.0
    %311 = vmatprep.mubr.f32.mxu0 0.0
    %312 = vmatmul.mubr.f32.gmra.mrb[0].mxu0 %v245
    %v313 = vpop.f32.mrb[0].mxu0
    %v314 = vadd.f32 0.0, %v313
    %v315 = vpop.f32.mrb[0].mxu0
    %316 = vdwg.mxu0
    %v317 = vadd.f32 %v201, %v314
    %v318 = vxor.u32 %v317, 2147483648
    %v319 = vmul.f32 %v318, 1.442695
    %v320 = vpow.pop %v319
    %v321 = vadd.f32 %v320, 1.0
    %v322 = vrcp.pop %v321
    %v323 = vmul.f32 1.0, %v322
    %v324 = vtanh.pop %v317
    %v325 = vmul.f32 %v323, 0.0
    %327 = vrot.lane.b32.xlu0 %v324, 64
    %v328 = vpop.permute.xlu0 %327
    %v330 = vmul.f32 %v323, %v328
    %332 = vrot.lane.b32.xlu0 %v330, 32
    %v333 = vpop.permute.xlu0 %332
    %v335 = vadd.f32 %v325, %v333
    %v336 = vtanh.pop %v335
    %338 = vrot.lane.b32.xlu0 %v336, 64
    %v339 = vpop.permute.xlu0 %338
    %v341 = vmul.f32 %v323, %v339
    %343 = vrot.lane.b32.xlu0 %v341, 32
    %v344 = vpop.permute.xlu0 %343
    %v346 = vsel %vm106, %v344, 0.0
    %vm347 = vcmask 523264
    %v349 = vsel %vm347, %v346, 0
    %351 = vmatprep.subr.mxu0 0.0
    %352 = vmatpush1.msra.mxu0 %v66
    %353 = vmatprep.subr.mxu0 0.0
    %354 = vmatpush1.msra.mxu0 %v67
    %355 = vmatprep.subr.mxu0 0.0
    %356 = vmatpush1.msra.mxu0 %v68
    %357 = vmatprep.subr.mxu0 0.0
    %358 = vmatpush1.msra.mxu0 %v69
    %359 = vmatprep.subr.mxu0 0.0
    %360 = vmatpush1.msra.mxu0 %v70
    %361 = vmatprep.subr.mxu0 0.0
    %362 = vmatpush1.msra.mxu0 %v71
    %363 = vmatprep.subr.mxu0 0.0
    %364 = vmatpush1.msra.mxu0 %v72
    %365 = vmatprep.subr.mxu0 0.0
    %366 = vmatpush1.msra.mxu0 %v73
    %367 = vmatprep.subr.mxu0 0.0
    %368 = vmatpush1.msra.mxu0 0.0
    %369 = vmatprep.subr.mxu0 0.0
    %370 = vmatpush1.msra.mxu0 0.0
    %371 = vmatprep.subr.mxu0 0.0
    %372 = vmatpush1.msra.mxu0 0.0
    %373 = vmatprep.subr.mxu0 0.0
    %374 = vmatpush1.msra.mxu0 0.0
    %375 = vmatprep.subr.mxu0 0.0
    %376 = vmatpush1.msra.mxu0 0.0
    %377 = vmatprep.subr.mxu0 0.0
    %378 = vmatpush1.msra.mxu0 0.0
    %379 = vmatprep.subr.mxu0 0.0
    %380 = vmatpush1.msra.mxu0 0.0
    %381 = vmatprep.subr.mxu0 0.0
    %382 = vmatpush1.msra.mxu0 0.0
    %383 = vmatprep.subr.mxu0 0.0
    %384 = vmatpush1.msra.mxu0 0.0
    %385 = vmatprep.subr.mxu0 0.0
    %386 = vmatpush1.msra.mxu0 0.0
    %387 = vmatprep.subr.mxu0 0.0
    %388 = vmatpush1.msra.mxu0 0.0
    %389 = vmatprep.subr.mxu0 0.0
    %390 = vmatpush1.msra.mxu0 0.0
    %391 = vmatprep.subr.mxu0 0.0
    %392 = vmatpush1.msra.mxu0 0.0
    %393 = vmatprep.subr.mxu0 0.0
    %394 = vmatpush1.msra.mxu0 0.0
    %395 = vmatprep.subr.mxu0 0.0
    %396 = vmatpush1.msra.mxu0 0.0
    %397 = vmatprep.subr.mxu0 0.0
    %398 = vmatpush1.msra.mxu0 0.0
    %399 = vmatprep.subr.mxu0 0.0
    %400 = vmatpush1.msra.mxu0 0.0
    %401 = vmatprep.subr.mxu0 0.0
    %402 = vmatpush1.msra.mxu0 0.0
    %403 = vmatprep.subr.mxu0 0.0
    %404 = vmatpush1.msra.mxu0 0.0
    %405 = vmatprep.subr.mxu0 0.0
    %406 = vmatpush1.msra.mxu0 0.0
    %407 = vmatprep.subr.mxu0 0.0
    %408 = vmatpush1.msra.mxu0 0.0
    %409 = vmatprep.subr.mxu0 0.0
    %410 = vmatpush1.msra.mxu0 0.0
    %411 = vmatprep.subr.mxu0 0.0
    %412 = vmatpush1.msra.mxu0 0.0
    %413 = vmatprep.subr.mxu0 0.0
    %414 = vmatpush1.msra.mxu0 0.0
    %415 = vmatprep.mubr.f32.mxu0 0.0
    %416 = vmatmul.mubr.f32.gmra.mrb[0].mxu0 %v349
    %v417 = vpop.f32.mrb[0].mxu0
    %v418 = vadd.f32 %v81, %v417
    %v419 = vpop.f32.mrb[0].mxu0
    %420 = vdwg.mxu0
    %v421 = vxor.u32 %v418, 2147483648
    %v422 = vmul.f32 %v421, 1.442695
    %v423 = vpow.pop %v422
    %v424 = vadd.f32 %v423, 1.0
    %v425 = vrcp.pop %v424
    %v426 = vmul.f32 1.0, %v425
    %v427 = vtanh.pop %v418
    %v428 = vmul.f32 %v426, 0.0
    %430 = vrot.lane.b32.xlu0 %v427, 64
    %v431 = vpop.permute.xlu0 %430
    %v433 = vmul.f32 %v426, %v431
    %435 = vrot.lane.b32.xlu0 %v433, 32
    %v436 = vpop.permute.xlu0 %435
    %v438 = vadd.f32 %v428, %v436
    %v439 = vtanh.pop %v438
    %441 = vrot.lane.b32.xlu0 %v439, 64
    %v442 = vpop.permute.xlu0 %441
    %v444 = vmul.f32 %v426, %v442
    %v445 = vsel %vm106, %v344, 0
    %447 = vmatprep.subr.mxu0 0.0
    %448 = vmatpush1.msra.mxu0 %v62
    %449 = vmatprep.subr.mxu0 0.0
    %450 = vmatpush1.msra.mxu0 %v63
    %451 = vmatprep.subr.mxu0 0.0
    %452 = vmatpush1.msra.mxu0 %v64
    %453 = vmatprep.subr.mxu0 0.0
    %454 = vmatpush1.msra.mxu0 %v65
    %455 = vmatprep.subr.mxu0 0.0
    %456 = vmatpush1.msra.mxu0 0.0
    %457 = vmatprep.subr.mxu0 0.0
    %458 = vmatpush1.msra.mxu0 0.0
    %459 = vmatprep.subr.mxu0 0.0
    %460 = vmatpush1.msra.mxu0 0.0
    %461 = vmatprep.subr.mxu0 0.0
    %462 = vmatpush1.msra.mxu0 0.0
    %463 = vmatprep.subr.mxu0 0.0
    %464 = vmatpush1.msra.mxu0 0.0
    %465 = vmatprep.subr.mxu0 0.0
    %466 = vmatpush1.msra.mxu0 0.0
    %467 = vmatprep.subr.mxu0 0.0
    %468 = vmatpush1.msra.mxu0 0.0
    %469 = vmatprep.subr.mxu0 0.0
    %470 = vmatpush1.msra.mxu0 0.0
    %471 = vmatprep.subr.mxu0 0.0
    %472 = vmatpush1.msra.mxu0 0.0
    %473 = vmatprep.subr.mxu0 0.0
    %474 = vmatpush1.msra.mxu0 0.0
    %475 = vmatprep.subr.mxu0 0.0
    %476 = vmatpush1.msra.mxu0 0.0
    %477 = vmatprep.subr.mxu0 0.0
    %478 = vmatpush1.msra.mxu0 0.0
    %479 = vmatprep.subr.mxu0 0.0
    %480 = vmatpush1.msra.mxu0 0.0
    %481 = vmatprep.subr.mxu0 0.0
    %482 = vmatpush1.msra.mxu0 0.0
    %483 = vmatprep.subr.mxu0 0.0
    %484 = vmatpush1.msra.mxu0 0.0
    %485 = vmatprep.subr.mxu0 0.0
    %486 = vmatpush1.msra.mxu0 0.0
    %487 = vmatprep.subr.mxu0 0.0
    %488 = vmatpush1.msra.mxu0 0.0
    %489 = vmatprep.subr.mxu0 0.0
    %490 = vmatpush1.msra.mxu0 0.0
    %491 = vmatprep.subr.mxu0 0.0
    %492 = vmatpush1.msra.mxu0 0.0
    %493 = vmatprep.subr.mxu0 0.0
    %494 = vmatpush1.msra.mxu0 0.0
    %495 = vmatprep.subr.mxu0 0.0
    %496 = vmatpush1.msra.mxu0 0.0
    %497 = vmatprep.subr.mxu0 0.0
    %498 = vmatpush1.msra.mxu0 0.0
    %499 = vmatprep.subr.mxu0 0.0
    %500 = vmatpush1.msra.mxu0 0.0
    %501 = vmatprep.subr.mxu0 0.0
    %502 = vmatpush1.msra.mxu0 0.0
    %503 = vmatprep.subr.mxu0 0.0
    %504 = vmatpush1.msra.mxu0 0.0
    %505 = vmatprep.subr.mxu0 0.0
    %506 = vmatpush1.msra.mxu0 0.0
    %507 = vmatprep.subr.mxu0 0.0
    %508 = vmatpush1.msra.mxu0 0.0
    %509 = vmatprep.subr.mxu0 0.0
    %510 = vmatpush1.msra.mxu0 0.0
    %511 = vmatprep.mubr.f32.mxu0 0.0
    %512 = vmatmul.mubr.f32.gmra.mrb[0].mxu0 %v445
    %v513 = vpop.f32.mrb[0].mxu0
    %v514 = vadd.f32 0.0, %v513
    %v515 = vpop.f32.mrb[0].mxu0
    %516 = vdwg.mxu0
    %v517 = vadd.f32 %v206, %v514
    %v518 = vxor.u32 %v517, 2147483648
    %v519 = vmul.f32 %v518, 1.442695
    %v520 = vpow.pop %v519
    %v521 = vadd.f32 %v520, 1.0
    %v522 = vrcp.pop %v521
    %v523 = vmul.f32 1.0, %v522
    %v524 = vtanh.pop %v517
    %v525 = vmul.f32 %v523, %v335
    %527 = vrot.lane.b32.xlu0 %v524, 64
    %v528 = vpop.permute.xlu0 %527
    %v530 = vmul.f32 %v523, %v528
    %532 = vrot.lane.b32.xlu0 %v530, 32
    %v533 = vpop.permute.xlu0 %532
    %v535 = vadd.f32 %v525, %v533
    %v536 = vtanh.pop %v535
    %538 = vrot.lane.b32.xlu0 %v536, 64
    %v539 = vpop.permute.xlu0 %538
    %v541 = vmul.f32 %v523, %v539
    %543 = vrot.lane.b32.xlu0 %v541, 32
    %v544 = vpop.permute.xlu0 %543
    %547 = vrot.lane.b32.xlu0 %v444, 64
    %v548 = vpop.permute.xlu0 %547
    %v550 = vsel %vm106, %v544, %v548
    %v552 = vsel %vm347, %v550, 0
    %554 = vmatprep.subr.mxu0 0.0
    %555 = vmatpush1.msra.mxu0 %v66
    %556 = vmatprep.subr.mxu0 0.0
    %557 = vmatpush1.msra.mxu0 %v67
    %558 = vmatprep.subr.mxu0 0.0
    %559 = vmatpush1.msra.mxu0 %v68
    %560 = vmatprep.subr.mxu0 0.0
    %561 = vmatpush1.msra.mxu0 %v69
    %562 = vmatprep.subr.mxu0 0.0
    %563 = vmatpush1.msra.mxu0 %v70
    %564 = vmatprep.subr.mxu0 0.0
    %565 = vmatpush1.msra.mxu0 %v71
    %566 = vmatprep.subr.mxu0 0.0
    %567 = vmatpush1.msra.mxu0 %v72
    %568 = vmatprep.subr.mxu0 0.0
    %569 = vmatpush1.msra.mxu0 %v73
    %570 = vmatprep.subr.mxu0 0.0
    %571 = vmatpush1.msra.mxu0 0.0
    %572 = vmatprep.subr.mxu0 0.0
    %573 = vmatpush1.msra.mxu0 0.0
    %574 = vmatprep.subr.mxu0 0.0
    %575 = vmatpush1.msra.mxu0 0.0
    %576 = vmatprep.subr.mxu0 0.0
    %577 = vmatpush1.msra.mxu0 0.0
    %578 = vmatprep.subr.mxu0 0.0
    %579 = vmatpush1.msra.mxu0 0.0
    %580 = vmatprep.subr.mxu0 0.0
    %581 = vmatpush1.msra.mxu0 0.0
    %582 = vmatprep.subr.mxu0 0.0
    %583 = vmatpush1.msra.mxu0 0.0
    %584 = vmatprep.subr.mxu0 0.0
    %585 = vmatpush1.msra.mxu0 0.0
    %586 = vmatprep.subr.mxu0 0.0
    %587 = vmatpush1.msra.mxu0 0.0
    %588 = vmatprep.subr.mxu0 0.0
    %589 = vmatpush1.msra.mxu0 0.0
    %590 = vmatprep.subr.mxu0 0.0
    %591 = vmatpush1.msra.mxu0 0.0
    %592 = vmatprep.subr.mxu0 0.0
    %593 = vmatpush1.msra.mxu0 0.0
    %594 = vmatprep.subr.mxu0 0.0
    %595 = vmatpush1.msra.mxu0 0.0
    %596 = vmatprep.subr.mxu0 0.0
    %597 = vmatpush1.msra.mxu0 0.0
    %598 = vmatprep.subr.mxu0 0.0
    %599 = vmatpush1.msra.mxu0 0.0
    %600 = vmatprep.subr.mxu0 0.0
    %601 = vmatpush1.msra.mxu0 0.0
    %602 = vmatprep.subr.mxu0 0.0
    %603 = vmatpush1.msra.mxu0 0.0
    %604 = vmatprep.subr.mxu0 0.0
    %605 = vmatpush1.msra.mxu0 0.0
    %606 = vmatprep.subr.mxu0 0.0
    %607 = vmatpush1.msra.mxu0 0.0
    %608 = vmatprep.subr.mxu0 0.0
    %609 = vmatpush1.msra.mxu0 0.0
    %610 = vmatprep.subr.mxu0 0.0
    %611 = vmatpush1.msra.mxu0 0.0
    %612 = vmatprep.subr.mxu0 0.0
    %613 = vmatpush1.msra.mxu0 0.0
    %614 = vmatprep.subr.mxu0 0.0
    %615 = vmatpush1.msra.mxu0 0.0
    %616 = vmatprep.subr.mxu0 0.0
    %617 = vmatpush1.msra.mxu0 0.0
    %618 = vmatprep.mubr.f32.mxu0 0.0
    %619 = vmatmul.mubr.f32.gmra.mrb[0].mxu0 %v552
    %v620 = vpop.f32.mrb[0].mxu0
    %v621 = vadd.f32 %v81, %v620
    %v622 = vpop.f32.mrb[0].mxu0
    %623 = vdwg.mxu0
    %v624 = vxor.u32 %v621, 2147483648
    %v625 = vmul.f32 %v624, 1.442695
    %v626 = vpow.pop %v625
    %v627 = vadd.f32 %v626, 1.0
    %v628 = vrcp.pop %v627
    %v629 = vmul.f32 1.0, %v628
    %v630 = vtanh.pop %v621
    %v631 = vmul.f32 %v629, %v438
    %633 = vrot.lane.b32.xlu0 %v630, 64
    %v634 = vpop.permute.xlu0 %633
    %v636 = vmul.f32 %v629, %v634
    %638 = vrot.lane.b32.xlu0 %v636, 32
    %v639 = vpop.permute.xlu0 %638
    %v641 = vadd.f32 %v631, %v639
    %v642 = vtanh.pop %v641
    %644 = vrot.lane.b32.xlu0 %v642, 64
    %v645 = vpop.permute.xlu0 %644
    %v647 = vmul.f32 %v629, %v645
    %v648 = vsel %vm106, %v544, 0
    %650 = vmatprep.subr.mxu0 0.0
    %651 = vmatpush1.msra.mxu0 %v62
    %652 = vmatprep.subr.mxu0 0.0
    %653 = vmatpush1.msra.mxu0 %v63
    %654 = vmatprep.subr.mxu0 0.0
    %655 = vmatpush1.msra.mxu0 %v64
    %656 = vmatprep.subr.mxu0 0.0
    %657 = vmatpush1.msra.mxu0 %v65
    %658 = vmatprep.subr.mxu0 0.0
    %659 = vmatpush1.msra.mxu0 0.0
    %660 = vmatprep.subr.mxu0 0.0
    %661 = vmatpush1.msra.mxu0 0.0
    %662 = vmatprep.subr.mxu0 0.0
    %663 = vmatpush1.msra.mxu0 0.0
    %664 = vmatprep.subr.mxu0 0.0
    %665 = vmatpush1.msra.mxu0 0.0
    %666 = vmatprep.subr.mxu0 0.0
    %667 = vmatpush1.msra.mxu0 0.0
    %668 = vmatprep.subr.mxu0 0.0
    %669 = vmatpush1.msra.mxu0 0.0
    %670 = vmatprep.subr.mxu0 0.0
    %671 = vmatpush1.msra.mxu0 0.0
    %672 = vmatprep.subr.mxu0 0.0
    %673 = vmatpush1.msra.mxu0 0.0
    %674 = vmatprep.subr.mxu0 0.0
    %675 = vmatpush1.msra.mxu0 0.0
    %676 = vmatprep.subr.mxu0 0.0
    %677 = vmatpush1.msra.mxu0 0.0
    %678 = vmatprep.subr.mxu0 0.0
    %679 = vmatpush1.msra.mxu0 0.0
    %680 = vmatprep.subr.mxu0 0.0
    %681 = vmatpush1.msra.mxu0 0.0
    %682 = vmatprep.subr.mxu0 0.0
    %683 = vmatpush1.msra.mxu0 0.0
    %684 = vmatprep.subr.mxu0 0.0
    %685 = vmatpush1.msra.mxu0 0.0
    %686 = vmatprep.subr.mxu0 0.0
    %687 = vmatpush1.msra.mxu0 0.0
    %688 = vmatprep.subr.mxu0 0.0
    %689 = vmatpush1.msra.mxu0 0.0
    %690 = vmatprep.subr.mxu0 0.0
    %691 = vmatpush1.msra.mxu0 0.0
    %692 = vmatprep.subr.mxu0 0.0
    %693 = vmatpush1.msra.mxu0 0.0
    %694 = vmatprep.subr.mxu0 0.0
    %695 = vmatpush1.msra.mxu0 0.0
    %696 = vmatprep.subr.mxu0 0.0
    %697 = vmatpush1.msra.mxu0 0.0
    %698 = vmatprep.subr.mxu0 0.0
    %699 = vmatpush1.msra.mxu0 0.0
    %700 = vmatprep.subr.mxu0 0.0
    %701 = vmatpush1.msra.mxu0 0.0
    %702 = vmatprep.subr.mxu0 0.0
    %703 = vmatpush1.msra.mxu0 0.0
    %704 = vmatprep.subr.mxu0 0.0
    %705 = vmatpush1.msra.mxu0 0.0
    %706 = vmatprep.subr.mxu0 0.0
    %707 = vmatpush1.msra.mxu0 0.0
    %708 = vmatprep.subr.mxu0 0.0
    %709 = vmatpush1.msra.mxu0 0.0
    %710 = vmatprep.subr.mxu0 0.0
    %711 = vmatpush1.msra.mxu0 0.0
    %712 = vmatprep.subr.mxu0 0.0
    %713 = vmatpush1.msra.mxu0 0.0
    %714 = vmatprep.mubr.f32.mxu0 0.0
    %715 = vmatmul.mubr.f32.gmra.mrb[0].mxu0 %v648
    %v716 = vpop.f32.mrb[0].mxu0
    %v717 = vadd.f32 0.0, %v716
    %v718 = vpop.f32.mrb[0].mxu0
    %719 = vdwg.mxu0
    %v720 = vadd.f32 %v211, %v717
    %v721 = vxor.u32 %v720, 2147483648
    %v722 = vmul.f32 %v721, 1.442695
    %v723 = vpow.pop %v722
    %v724 = vadd.f32 %v723, 1.0
    %v725 = vrcp.pop %v724
    %v726 = vmul.f32 1.0, %v725
    %v727 = vtanh.pop %v720
    %v728 = vmul.f32 %v726, %v535
    %730 = vrot.lane.b32.xlu0 %v727, 64
    %v731 = vpop.permute.xlu0 %730
    %v733 = vmul.f32 %v726, %v731
    %735 = vrot.lane.b32.xlu0 %v733, 32
    %v736 = vpop.permute.xlu0 %735
    %v738 = vadd.f32 %v728, %v736
    %v739 = vtanh.pop %v738
    %741 = vrot.lane.b32.xlu0 %v739, 64
    %v742 = vpop.permute.xlu0 %741
    %v744 = vmul.f32 %v726, %v742
    %746 = vrot.lane.b32.xlu0 %v744, 32
    %v747 = vpop.permute.xlu0 %746
    %750 = vrot.lane.b32.xlu0 %v647, 64
    %v751 = vpop.permute.xlu0 %750
    %v753 = vsel %vm106, %v747, %v751
    %v755 = vsel %vm347, %v753, 0
    %757 = vmatprep.subr.mxu0 0.0
    %758 = vmatpush1.msra.mxu0 %v66
    %759 = vmatprep.subr.mxu0 0.0
    %760 = vmatpush1.msra.mxu0 %v67
    %761 = vmatprep.subr.mxu0 0.0
    %762 = vmatpush1.msra.mxu0 %v68
    %763 = vmatprep.subr.mxu0 0.0
    %764 = vmatpush1.msra.mxu0 %v69
    %765 = vmatprep.subr.mxu0 0.0
    %766 = vmatpush1.msra.mxu0 %v70
    %767 = vmatprep.subr.mxu0 0.0
    %768 = vmatpush1.msra.mxu0 %v71
    %769 = vmatprep.subr.mxu0 0.0
    %770 = vmatpush1.msra.mxu0 %v72
    %771 = vmatprep.subr.mxu0 0.0
    %772 = vmatpush1.msra.mxu0 %v73
    %773 = vmatprep.subr.mxu0 0.0
    %774 = vmatpush1.msra.mxu0 0.0
    %775 = vmatprep.subr.mxu0 0.0
    %776 = vmatpush1.msra.mxu0 0.0
    %777 = vmatprep.subr.mxu0 0.0
    %778 = vmatpush1.msra.mxu0 0.0
    %779 = vmatprep.subr.mxu0 0.0
    %780 = vmatpush1.msra.mxu0 0.0
    %781 = vmatprep.subr.mxu0 0.0
    %782 = vmatpush1.msra.mxu0 0.0
    %783 = vmatprep.subr.mxu0 0.0
    %784 = vmatpush1.msra.mxu0 0.0
    %785 = vmatprep.subr.mxu0 0.0
    %786 = vmatpush1.msra.mxu0 0.0
    %787 = vmatprep.subr.mxu0 0.0
    %788 = vmatpush1.msra.mxu0 0.0
    %789 = vmatprep.subr.mxu0 0.0
    %790 = vmatpush1.msra.mxu0 0.0
    %791 = vmatprep.subr.mxu0 0.0
    %792 = vmatpush1.msra.mxu0 0.0
    %793 = vmatprep.subr.mxu0 0.0
    %794 = vmatpush1.msra.mxu0 0.0
    %795 = vmatprep.subr.mxu0 0.0
    %796 = vmatpush1.msra.mxu0 0.0
    %797 = vmatprep.subr.mxu0 0.0
    %798 = vmatpush1.msra.mxu0 0.0
    %799 = vmatprep.subr.mxu0 0.0
    %800 = vmatpush1.msra.mxu0 0.0
    %801 = vmatprep.subr.mxu0 0.0
    %802 = vmatpush1.msra.mxu0 0.0
    %803 = vmatprep.subr.mxu0 0.0
    %804 = vmatpush1.msra.mxu0 0.0
    %805 = vmatprep.subr.mxu0 0.0
    %806 = vmatpush1.msra.mxu0 0.0
    %807 = vmatprep.subr.mxu0 0.0
    %808 = vmatpush1.msra.mxu0 0.0
    %809 = vmatprep.subr.mxu0 0.0
    %810 = vmatpush1.msra.mxu0 0.0
    %811 = vmatprep.subr.mxu0 0.0
    %812 = vmatpush1.msra.mxu0 0.0
    %813 = vmatprep.subr.mxu0 0.0
    %814 = vmatpush1.msra.mxu0 0.0
    %815 = vmatprep.subr.mxu0 0.0
    %816 = vmatpush1.msra.mxu0 0.0
    %817 = vmatprep.subr.mxu0 0.0
    %818 = vmatpush1.msra.mxu0 0.0
    %819 = vmatprep.subr.mxu0 0.0
    %820 = vmatpush1.msra.mxu0 0.0
    %821 = vmatprep.mubr.f32.mxu0 0.0
    %822 = vmatmul.mubr.f32.gmra.mrb[0].mxu0 %v755
    %v823 = vpop.f32.mrb[0].mxu0
    %v824 = vadd.f32 %v81, %v823
    %v825 = vpop.f32.mrb[0].mxu0
    %826 = vdwg.mxu0
    %v827 = vxor.u32 %v824, 2147483648
    %v828 = vmul.f32 %v827, 1.442695
    %v829 = vpow.pop %v828
    %v830 = vadd.f32 %v829, 1.0
    %v831 = vrcp.pop %v830
    %v832 = vmul.f32 1.0, %v831
    %v833 = vtanh.pop %v824
    %v834 = vmul.f32 %v832, %v641
    %836 = vrot.lane.b32.xlu0 %v833, 64
    %v837 = vpop.permute.xlu0 %836
    %v839 = vmul.f32 %v832, %v837
    %841 = vrot.lane.b32.xlu0 %v839, 32
    %v842 = vpop.permute.xlu0 %841
    %v844 = vadd.f32 %v834, %v842
    %v845 = vtanh.pop %v844
    %847 = vrot.lane.b32.xlu0 %v845, 64
    %v848 = vpop.permute.xlu0 %847
    %v850 = vmul.f32 %v832, %v848
    %v851 = vsel %vm106, %v747, 0
    %853 = vmatprep.subr.mxu0 0.0
    %854 = vmatpush1.msra.mxu0 %v62
    %855 = vmatprep.subr.mxu0 0.0
    %856 = vmatpush1.msra.mxu0 %v63
    %857 = vmatprep.subr.mxu0 0.0
    %858 = vmatpush1.msra.mxu0 %v64
    %859 = vmatprep.subr.mxu0 0.0
    %860 = vmatpush1.msra.mxu0 %v65
    %861 = vmatprep.subr.mxu0 0.0
    %862 = vmatpush1.msra.mxu0 0.0
    %863 = vmatprep.subr.mxu0 0.0
    %864 = vmatpush1.msra.mxu0 0.0
    %865 = vmatprep.subr.mxu0 0.0
    %866 = vmatpush1.msra.mxu0 0.0
    %867 = vmatprep.subr.mxu0 0.0
    %868 = vmatpush1.msra.mxu0 0.0
    %869 = vmatprep.subr.mxu0 0.0
    %870 = vmatpush1.msra.mxu0 0.0
    %871 = vmatprep.subr.mxu0 0.0
    %872 = vmatpush1.msra.mxu0 0.0
    %873 = vmatprep.subr.mxu0 0.0
    %874 = vmatpush1.msra.mxu0 0.0
    %875 = vmatprep.subr.mxu0 0.0
    %876 = vmatpush1.msra.mxu0 0.0
    %877 = vmatprep.subr.mxu0 0.0
    %878 = vmatpush1.msra.mxu0 0.0
    %879 = vmatprep.subr.mxu0 0.0
    %880 = vmatpush1.msra.mxu0 0.0
    %881 = vmatprep.subr.mxu0 0.0
    %882 = vmatpush1.msra.mxu0 0.0
    %883 = vmatprep.subr.mxu0 0.0
    %884 = vmatpush1.msra.mxu0 0.0
    %885 = vmatprep.subr.mxu0 0.0
    %886 = vmatpush1.msra.mxu0 0.0
    %887 = vmatprep.subr.mxu0 0.0
    %888 = vmatpush1.msra.mxu0 0.0
    %889 = vmatprep.subr.mxu0 0.0
    %890 = vmatpush1.msra.mxu0 0.0
    %891 = vmatprep.subr.mxu0 0.0
    %892 = vmatpush1.msra.mxu0 0.0
    %893 = vmatprep.subr.mxu0 0.0
    %894 = vmatpush1.msra.mxu0 0.0
    %895 = vmatprep.subr.mxu0 0.0
    %896 = vmatpush1.msra.mxu0 0.0
    %897 = vmatprep.subr.mxu0 0.0
    %898 = vmatpush1.msra.mxu0 0.0
    %899 = vmatprep.subr.mxu0 0.0
    %900 = vmatpush1.msra.mxu0 0.0
    %901 = vmatprep.subr.mxu0 0.0
    %902 = vmatpush1.msra.mxu0 0.0
    %903 = vmatprep.subr.mxu0 0.0
    %904 = vmatpush1.msra.mxu0 0.0
    %905 = vmatprep.subr.mxu0 0.0
    %906 = vmatpush1.msra.mxu0 0.0
    %907 = vmatprep.subr.mxu0 0.0
    %908 = vmatpush1.msra.mxu0 0.0
    %909 = vmatprep.subr.mxu0 0.0
    %910 = vmatpush1.msra.mxu0 0.0
    %911 = vmatprep.subr.mxu0 0.0
    %912 = vmatpush1.msra.mxu0 0.0
    %913 = vmatprep.subr.mxu0 0.0
    %914 = vmatpush1.msra.mxu0 0.0
    %915 = vmatprep.subr.mxu0 0.0
    %916 = vmatpush1.msra.mxu0 0.0
    %917 = vmatprep.mubr.f32.mxu0 0.0
    %918 = vmatmul.mubr.f32.gmra.mrb[0].mxu0 %v851
    %v919 = vpop.f32.mrb[0].mxu0
    %v920 = vadd.f32 0.0, %v919
    %v921 = vpop.f32.mrb[0].mxu0
    %922 = vdwg.mxu0
    %v923 = vadd.f32 %v216, %v920
    %v924 = vxor.u32 %v923, 2147483648
    %v925 = vmul.f32 %v924, 1.442695
    %v926 = vpow.pop %v925
    %v927 = vadd.f32 %v926, 1.0
    %v928 = vrcp.pop %v927
    %v929 = vmul.f32 1.0, %v928
    %v930 = vtanh.pop %v923
    %v931 = vmul.f32 %v929, %v738
    %933 = vrot.lane.b32.xlu0 %v930, 64
    %v934 = vpop.permute.xlu0 %933
    %v936 = vmul.f32 %v929, %v934
    %938 = vrot.lane.b32.xlu0 %v936, 32
    %v939 = vpop.permute.xlu0 %938
    %v941 = vadd.f32 %v931, %v939
    %v942 = vtanh.pop %v941
    %944 = vrot.lane.b32.xlu0 %v942, 64
    %v945 = vpop.permute.xlu0 %944
    %v947 = vmul.f32 %v929, %v945
    %949 = vrot.lane.b32.xlu0 %v947, 32
    %v950 = vpop.permute.xlu0 %949
    %953 = vrot.lane.b32.xlu0 %v850, 64
    %v954 = vpop.permute.xlu0 %953
    %v956 = vsel %vm106, %v950, %v954
    %v958 = vsel %vm347, %v956, 0
    %960 = vmatprep.subr.mxu0 0.0
    %961 = vmatpush1.msra.mxu0 %v66
    %962 = vmatprep.subr.mxu0 0.0
    %963 = vmatpush1.msra.mxu0 %v67
    %964 = vmatprep.subr.mxu0 0.0
    %965 = vmatpush1.msra.mxu0 %v68
    %966 = vmatprep.subr.mxu0 0.0
    %967 = vmatpush1.msra.mxu0 %v69
    %968 = vmatprep.subr.mxu0 0.0
    %969 = vmatpush1.msra.mxu0 %v70
    %970 = vmatprep.subr.mxu0 0.0
    %971 = vmatpush1.msra.mxu0 %v71
    %972 = vmatprep.subr.mxu0 0.0
    %973 = vmatpush1.msra.mxu0 %v72
    %974 = vmatprep.subr.mxu0 0.0
    %975 = vmatpush1.msra.mxu0 %v73
    %976 = vmatprep.subr.mxu0 0.0
    %977 = vmatpush1.msra.mxu0 0.0
    %978 = vmatprep.subr.mxu0 0.0
    %979 = vmatpush1.msra.mxu0 0.0
    %980 = vmatprep.subr.mxu0 0.0
    %981 = vmatpush1.msra.mxu0 0.0
    %982 = vmatprep.subr.mxu0 0.0
    %983 = vmatpush1.msra.mxu0 0.0
    %984 = vmatprep.subr.mxu0 0.0
    %985 = vmatpush1.msra.mxu0 0.0
    %986 = vmatprep.subr.mxu0 0.0
    %987 = vmatpush1.msra.mxu0 0.0
    %988 = vmatprep.subr.mxu0 0.0
    %989 = vmatpush1.msra.mxu0 0.0
    %990 = vmatprep.subr.mxu0 0.0
    %991 = vmatpush1.msra.mxu0 0.0
    %992 = vmatprep.subr.mxu0 0.0
    %993 = vmatpush1.msra.mxu0 0.0
    %994 = vmatprep.subr.mxu0 0.0
    %995 = vmatpush1.msra.mxu0 0.0
    %996 = vmatprep.subr.mxu0 0.0
    %997 = vmatpush1.msra.mxu0 0.0
    %998 = vmatprep.subr.mxu0 0.0
    %999 = vmatpush1.msra.mxu0 0.0
    %1000 = vmatprep.subr.mxu0 0.0
    %1001 = vmatpush1.msra.mxu0 0.0
    %1002 = vmatprep.subr.mxu0 0.0
    %1003 = vmatpush1.msra.mxu0 0.0
    %1004 = vmatprep.subr.mxu0 0.0
    %1005 = vmatpush1.msra.mxu0 0.0
    %1006 = vmatprep.subr.mxu0 0.0
    %1007 = vmatpush1.msra.mxu0 0.0
    %1008 = vmatprep.subr.mxu0 0.0
    %1009 = vmatpush1.msra.mxu0 0.0
    %1010 = vmatprep.subr.mxu0 0.0
    %1011 = vmatpush1.msra.mxu0 0.0
    %1012 = vmatprep.subr.mxu0 0.0
    %1013 = vmatpush1.msra.mxu0 0.0
    %1014 = vmatprep.subr.mxu0 0.0
    %1015 = vmatpush1.msra.mxu0 0.0
    %1016 = vmatprep.subr.mxu0 0.0
    %1017 = vmatpush1.msra.mxu0 0.0
    %1018 = vmatprep.subr.mxu0 0.0
    %1019 = vmatpush1.msra.mxu0 0.0
    %1020 = vmatprep.subr.mxu0 0.0
    %1021 = vmatpush1.msra.mxu0 0.0
    %1022 = vmatprep.subr.mxu0 0.0
    %1023 = vmatpush1.msra.mxu0 0.0
    %1024 = vmatprep.mubr.f32.mxu0 0.0
    %1025 = vmatmul.mubr.f32.gmra.mrb[0].mxu0 %v958
    %v1026 = vpop.f32.mrb[0].mxu0
    %v1027 = vadd.f32 %v81, %v1026
    %v1028 = vpop.f32.mrb[0].mxu0
    %1029 = vdwg.mxu0
    %v1030 = vxor.u32 %v1027, 2147483648
    %v1031 = vmul.f32 %v1030, 1.442695
    %v1032 = vpow.pop %v1031
    %v1033 = vadd.f32 %v1032, 1.0
    %v1034 = vrcp.pop %v1033
    %v1035 = vmul.f32 1.0, %v1034
    %v1036 = vtanh.pop %v1027
    %v1037 = vmul.f32 %v1035, %v844
    %1039 = vrot.lane.b32.xlu0 %v1036, 64
    %v1040 = vpop.permute.xlu0 %1039
    %v1042 = vmul.f32 %v1035, %v1040
    %1044 = vrot.lane.b32.xlu0 %v1042, 32
    %v1045 = vpop.permute.xlu0 %1044
    %v1047 = vadd.f32 %v1037, %v1045
    %v1048 = vtanh.pop %v1047
    %1050 = vrot.lane.b32.xlu0 %v1048, 64
    %v1051 = vpop.permute.xlu0 %1050
    %v1053 = vmul.f32 %v1035, %v1051
    %v1054 = vsel %vm106, %v950, 0
    %1056 = vmatprep.subr.mxu0 0.0
    %1057 = vmatpush1.msra.mxu0 %v62
    %1058 = vmatprep.subr.mxu0 0.0
    %1059 = vmatpush1.msra.mxu0 %v63
    %1060 = vmatprep.subr.mxu0 0.0
    %1061 = vmatpush1.msra.mxu0 %v64
    %1062 = vmatprep.subr.mxu0 0.0
    %1063 = vmatpush1.msra.mxu0 %v65
    %1064 = vmatprep.subr.mxu0 0.0
    %1065 = vmatpush1.msra.mxu0 0.0
    %1066 = vmatprep.subr.mxu0 0.0
    %1067 = vmatpush1.msra.mxu0 0.0
    %1068 = vmatprep.subr.mxu0 0.0
    %1069 = vmatpush1.msra.mxu0 0.0
    %1070 = vmatprep.subr.mxu0 0.0
    %1071 = vmatpush1.msra.mxu0 0.0
    %1072 = vmatprep.subr.mxu0 0.0
    %1073 = vmatpush1.msra.mxu0 0.0
    %1074 = vmatprep.subr.mxu0 0.0
    %1075 = vmatpush1.msra.mxu0 0.0
    %1076 = vmatprep.subr.mxu0 0.0
    %1077 = vmatpush1.msra.mxu0 0.0
    %1078 = vmatprep.subr.mxu0 0.0
    %1079 = vmatpush1.msra.mxu0 0.0
    %1080 = vmatprep.subr.mxu0 0.0
    %1081 = vmatpush1.msra.mxu0 0.0
    %1082 = vmatprep.subr.mxu0 0.0
    %1083 = vmatpush1.msra.mxu0 0.0
    %1084 = vmatprep.subr.mxu0 0.0
    %1085 = vmatpush1.msra.mxu0 0.0
    %1086 = vmatprep.subr.mxu0 0.0
    %1087 = vmatpush1.msra.mxu0 0.0
    %1088 = vmatprep.subr.mxu0 0.0
    %1089 = vmatpush1.msra.mxu0 0.0
    %1090 = vmatprep.subr.mxu0 0.0
    %1091 = vmatpush1.msra.mxu0 0.0
    %1092 = vmatprep.subr.mxu0 0.0
    %1093 = vmatpush1.msra.mxu0 0.0
    %1094 = vmatprep.subr.mxu0 0.0
    %1095 = vmatpush1.msra.mxu0 0.0
    %1096 = vmatprep.subr.mxu0 0.0
    %1097 = vmatpush1.msra.mxu0 0.0
    %1098 = vmatprep.subr.mxu0 0.0
    %1099 = vmatpush1.msra.mxu0 0.0
    %1100 = vmatprep.subr.mxu0 0.0
    %1101 = vmatpush1.msra.mxu0 0.0
    %1102 = vmatprep.subr.mxu0 0.0
    %1103 = vmatpush1.msra.mxu0 0.0
    %1104 = vmatprep.subr.mxu0 0.0
    %1105 = vmatpush1.msra.mxu0 0.0
    %1106 = vmatprep.subr.mxu0 0.0
    %1107 = vmatpush1.msra.mxu0 0.0
    %1108 = vmatprep.subr.mxu0 0.0
    %1109 = vmatpush1.msra.mxu0 0.0
    %1110 = vmatprep.subr.mxu0 0.0
    %1111 = vmatpush1.msra.mxu0 0.0
    %1112 = vmatprep.subr.mxu0 0.0
    %1113 = vmatpush1.msra.mxu0 0.0
    %1114 = vmatprep.subr.mxu0 0.0
    %1115 = vmatpush1.msra.mxu0 0.0
    %1116 = vmatprep.subr.mxu0 0.0
    %1117 = vmatpush1.msra.mxu0 0.0
    %1118 = vmatprep.subr.mxu0 0.0
    %1119 = vmatpush1.msra.mxu0 0.0
    %1120 = vmatprep.mubr.f32.mxu0 0.0
    %1121 = vmatmul.mubr.f32.gmra.mrb[0].mxu0 %v1054
    %v1122 = vpop.f32.mrb[0].mxu0
    %v1123 = vadd.f32 0.0, %v1122
    %v1124 = vpop.f32.mrb[0].mxu0
    %1125 = vdwg.mxu0
    %v1126 = vadd.f32 %v221, %v1123
    %v1127 = vxor.u32 %v1126, 2147483648
    %v1128 = vmul.f32 %v1127, 1.442695
    %v1129 = vpow.pop %v1128
    %v1130 = vadd.f32 %v1129, 1.0
    %v1131 = vrcp.pop %v1130
    %v1132 = vmul.f32 1.0, %v1131
    %v1133 = vtanh.pop %v1126
    %v1134 = vmul.f32 %v1132, %v941
    %1136 = vrot.lane.b32.xlu0 %v1133, 64
    %v1137 = vpop.permute.xlu0 %1136
    %v1139 = vmul.f32 %v1132, %v1137
    %1141 = vrot.lane.b32.xlu0 %v1139, 32
    %v1142 = vpop.permute.xlu0 %1141
    %v1144 = vadd.f32 %v1134, %v1142
    %v1145 = vtanh.pop %v1144
    %1147 = vrot.lane.b32.xlu0 %v1145, 64
    %v1148 = vpop.permute.xlu0 %1147
    %v1150 = vmul.f32 %v1132, %v1148
    %1152 = vrot.lane.b32.xlu0 %v1150, 32
    %v1153 = vpop.permute.xlu0 %1152
    %1156 = vrot.lane.b32.xlu0 %v1053, 64
    %v1157 = vpop.permute.xlu0 %1156
    %v1159 = vsel %vm106, %v1153, %v1157
    %v1161 = vsel %vm347, %v1159, 0
    %1163 = vmatprep.subr.mxu0 0.0
    %1164 = vmatpush1.msra.mxu0 %v66
    %1165 = vmatprep.subr.mxu0 0.0
    %1166 = vmatpush1.msra.mxu0 %v67
    %1167 = vmatprep.subr.mxu0 0.0
    %1168 = vmatpush1.msra.mxu0 %v68
    %1169 = vmatprep.subr.mxu0 0.0
    %1170 = vmatpush1.msra.mxu0 %v69
    %1171 = vmatprep.subr.mxu0 0.0
    %1172 = vmatpush1.msra.mxu0 %v70
    %1173 = vmatprep.subr.mxu0 0.0
    %1174 = vmatpush1.msra.mxu0 %v71
    %1175 = vmatprep.subr.mxu0 0.0
    %1176 = vmatpush1.msra.mxu0 %v72
    %1177 = vmatprep.subr.mxu0 0.0
    %1178 = vmatpush1.msra.mxu0 %v73
    %1179 = vmatprep.subr.mxu0 0.0
    %1180 = vmatpush1.msra.mxu0 0.0
    %1181 = vmatprep.subr.mxu0 0.0
    %1182 = vmatpush1.msra.mxu0 0.0
    %1183 = vmatprep.subr.mxu0 0.0
    %1184 = vmatpush1.msra.mxu0 0.0
    %1185 = vmatprep.subr.mxu0 0.0
    %1186 = vmatpush1.msra.mxu0 0.0
    %1187 = vmatprep.subr.mxu0 0.0
    %1188 = vmatpush1.msra.mxu0 0.0
    %1189 = vmatprep.subr.mxu0 0.0
    %1190 = vmatpush1.msra.mxu0 0.0
    %1191 = vmatprep.subr.mxu0 0.0
    %1192 = vmatpush1.msra.mxu0 0.0
    %1193 = vmatprep.subr.mxu0 0.0
    %1194 = vmatpush1.msra.mxu0 0.0
    %1195 = vmatprep.subr.mxu0 0.0
    %1196 = vmatpush1.msra.mxu0 0.0
    %1197 = vmatprep.subr.mxu0 0.0
    %1198 = vmatpush1.msra.mxu0 0.0
    %1199 = vmatprep.subr.mxu0 0.0
    %1200 = vmatpush1.msra.mxu0 0.0
    %1201 = vmatprep.subr.mxu0 0.0
    %1202 = vmatpush1.msra.mxu0 0.0
    %1203 = vmatprep.subr.mxu0 0.0
    %1204 = vmatpush1.msra.mxu0 0.0
    %1205 = vmatprep.subr.mxu0 0.0
    %1206 = vmatpush1.msra.mxu0 0.0
    %1207 = vmatprep.subr.mxu0 0.0
    %1208 = vmatpush1.msra.mxu0 0.0
    %1209 = vmatprep.subr.mxu0 0.0
    %1210 = vmatpush1.msra.mxu0 0.0
    %1211 = vmatprep.subr.mxu0 0.0
    %1212 = vmatpush1.msra.mxu0 0.0
    %1213 = vmatprep.subr.mxu0 0.0
    %1214 = vmatpush1.msra.mxu0 0.0
    %1215 = vmatprep.subr.mxu0 0.0
    %1216 = vmatpush1.msra.mxu0 0.0
    %1217 = vmatprep.subr.mxu0 0.0
    %1218 = vmatpush1.msra.mxu0 0.0
    %1219 = vmatprep.subr.mxu0 0.0
    %1220 = vmatpush1.msra.mxu0 0.0
    %1221 = vmatprep.subr.mxu0 0.0
    %1222 = vmatpush1.msra.mxu0 0.0
    %1223 = vmatprep.subr.mxu0 0.0
    %1224 = vmatpush1.msra.mxu0 0.0
    %1225 = vmatprep.subr.mxu0 0.0
    %1226 = vmatpush1.msra.mxu0 0.0
    %1227 = vmatprep.mubr.f32.mxu0 0.0
    %1228 = vmatmul.mubr.f32.gmra.mrb[0].mxu0 %v1161
    %v1229 = vpop.f32.mrb[0].mxu0
    %v1230 = vadd.f32 %v81, %v1229
    %v1231 = vpop.f32.mrb[0].mxu0
    %1232 = vdwg.mxu0
    %v1233 = vxor.u32 %v1230, 2147483648
    %v1234 = vmul.f32 %v1233, 1.442695
    %v1235 = vpow.pop %v1234
    %v1236 = vadd.f32 %v1235, 1.0
    %v1237 = vrcp.pop %v1236
    %v1238 = vmul.f32 1.0, %v1237
    %v1239 = vtanh.pop %v1230
    %v1240 = vmul.f32 %v1238, %v1047
    %1242 = vrot.lane.b32.xlu0 %v1239, 64
    %v1243 = vpop.permute.xlu0 %1242
    %v1245 = vmul.f32 %v1238, %v1243
    %1247 = vrot.lane.b32.xlu0 %v1245, 32
    %v1248 = vpop.permute.xlu0 %1247
    %v1250 = vadd.f32 %v1240, %v1248
    %v1251 = vtanh.pop %v1250
    %1253 = vrot.lane.b32.xlu0 %v1251, 64
    %v1254 = vpop.permute.xlu0 %1253
    %v1256 = vmul.f32 %v1238, %v1254
    %v1257 = vsel %vm106, %v1153, 0
    %1259 = vmatprep.subr.mxu0 0.0
    %1260 = vmatpush1.msra.mxu0 %v62
    %1261 = vmatprep.subr.mxu0 0.0
    %1262 = vmatpush1.msra.mxu0 %v63
    %1263 = vmatprep.subr.mxu0 0.0
    %1264 = vmatpush1.msra.mxu0 %v64
    %1265 = vmatprep.subr.mxu0 0.0
    %1266 = vmatpush1.msra.mxu0 %v65
    %1267 = vmatprep.subr.mxu0 0.0
    %1268 = vmatpush1.msra.mxu0 0.0
    %1269 = vmatprep.subr.mxu0 0.0
    %1270 = vmatpush1.msra.mxu0 0.0
    %1271 = vmatprep.subr.mxu0 0.0
    %1272 = vmatpush1.msra.mxu0 0.0
    %1273 = vmatprep.subr.mxu0 0.0
    %1274 = vmatpush1.msra.mxu0 0.0
    %1275 = vmatprep.subr.mxu0 0.0
    %1276 = vmatpush1.msra.mxu0 0.0
    %1277 = vmatprep.subr.mxu0 0.0
    %1278 = vmatpush1.msra.mxu0 0.0
    %1279 = vmatprep.subr.mxu0 0.0
    %1280 = vmatpush1.msra.mxu0 0.0
    %1281 = vmatprep.subr.mxu0 0.0
    %1282 = vmatpush1.msra.mxu0 0.0
    %1283 = vmatprep.subr.mxu0 0.0
    %1284 = vmatpush1.msra.mxu0 0.0
    %1285 = vmatprep.subr.mxu0 0.0
    %1286 = vmatpush1.msra.mxu0 0.0
    %1287 = vmatprep.subr.mxu0 0.0
    %1288 = vmatpush1.msra.mxu0 0.0
    %1289 = vmatprep.subr.mxu0 0.0
    %1290 = vmatpush1.msra.mxu0 0.0
    %1291 = vmatprep.subr.mxu0 0.0
    %1292 = vmatpush1.msra.mxu0 0.0
    %1293 = vmatprep.subr.mxu0 0.0
    %1294 = vmatpush1.msra.mxu0 0.0
    %1295 = vmatprep.subr.mxu0 0.0
    %1296 = vmatpush1.msra.mxu0 0.0
    %1297 = vmatprep.subr.mxu0 0.0
    %1298 = vmatpush1.msra.mxu0 0.0
    %1299 = vmatprep.subr.mxu0 0.0
    %1300 = vmatpush1.msra.mxu0 0.0
    %1301 = vmatprep.subr.mxu0 0.0
    %1302 = vmatpush1.msra.mxu0 0.0
    %1303 = vmatprep.subr.mxu0 0.0
    %1304 = vmatpush1.msra.mxu0 0.0
    %1305 = vmatprep.subr.mxu0 0.0
    %1306 = vmatpush1.msra.mxu0 0.0
    %1307 = vmatprep.subr.mxu0 0.0
    %1308 = vmatpush1.msra.mxu0 0.0
    %1309 = vmatprep.subr.mxu0 0.0
    %1310 = vmatpush1.msra.mxu0 0.0
    %1311 = vmatprep.subr.mxu0 0.0
    %1312 = vmatpush1.msra.mxu0 0.0
    %1313 = vmatprep.subr.mxu0 0.0
    %1314 = vmatpush1.msra.mxu0 0.0
    %1315 = vmatprep.subr.mxu0 0.0
    %1316 = vmatpush1.msra.mxu0 0.0
    %1317 = vmatprep.subr.mxu0 0.0
    %1318 = vmatpush1.msra.mxu0 0.0
    %1319 = vmatprep.subr.mxu0 0.0
    %1320 = vmatpush1.msra.mxu0 0.0
    %1321 = vmatprep.subr.mxu0 0.0
    %1322 = vmatpush1.msra.mxu0 0.0
    %1323 = vmatprep.mubr.f32.mxu0 0.0
    %1324 = vmatmul.mubr.f32.gmra.mrb[0].mxu0 %v1257
    %v1325 = vpop.f32.mrb[0].mxu0
    %v1326 = vadd.f32 0.0, %v1325
    %v1327 = vpop.f32.mrb[0].mxu0
    %1328 = vdwg.mxu0
    %v1329 = vadd.f32 %v226, %v1326
    %v1330 = vxor.u32 %v1329, 2147483648
    %v1331 = vmul.f32 %v1330, 1.442695
    %v1332 = vpow.pop %v1331
    %v1333 = vadd.f32 %v1332, 1.0
    %v1334 = vrcp.pop %v1333
    %v1335 = vmul.f32 1.0, %v1334
    %v1336 = vtanh.pop %v1329
    %v1337 = vmul.f32 %v1335, %v1144
    %1339 = vrot.lane.b32.xlu0 %v1336, 64
    %v1340 = vpop.permute.xlu0 %1339
    %v1342 = vmul.f32 %v1335, %v1340
    %1344 = vrot.lane.b32.xlu0 %v1342, 32
    %v1345 = vpop.permute.xlu0 %1344
    %v1347 = vadd.f32 %v1337, %v1345
    %v1348 = vtanh.pop %v1347
    %1350 = vrot.lane.b32.xlu0 %v1348, 64
    %v1351 = vpop.permute.xlu0 %1350
    %v1353 = vmul.f32 %v1335, %v1351
    %1355 = vrot.lane.b32.xlu0 %v1353, 32
    %v1356 = vpop.permute.xlu0 %1355
    %1359 = vrot.lane.b32.xlu0 %v1256, 64
    %v1360 = vpop.permute.xlu0 %1359
    %v1362 = vsel %vm106, %v1356, %v1360
    %v1364 = vsel %vm347, %v1362, 0
    %1366 = vmatprep.subr.mxu0 0.0
    %1367 = vmatpush1.msra.mxu0 %v66
    %1368 = vmatprep.subr.mxu0 0.0
    %1369 = vmatpush1.msra.mxu0 %v67
    %1370 = vmatprep.subr.mxu0 0.0
    %1371 = vmatpush1.msra.mxu0 %v68
    %1372 = vmatprep.subr.mxu0 0.0
    %1373 = vmatpush1.msra.mxu0 %v69
    %1374 = vmatprep.subr.mxu0 0.0
    %1375 = vmatpush1.msra.mxu0 %v70
    %1376 = vmatprep.subr.mxu0 0.0
    %1377 = vmatpush1.msra.mxu0 %v71
    %1378 = vmatprep.subr.mxu0 0.0
    %1379 = vmatpush1.msra.mxu0 %v72
    %1380 = vmatprep.subr.mxu0 0.0
    %1381 = vmatpush1.msra.mxu0 %v73
    %1382 = vmatprep.subr.mxu0 0.0
    %1383 = vmatpush1.msra.mxu0 0.0
    %1384 = vmatprep.subr.mxu0 0.0
    %1385 = vmatpush1.msra.mxu0 0.0
    %1386 = vmatprep.subr.mxu0 0.0
    %1387 = vmatpush1.msra.mxu0 0.0
    %1388 = vmatprep.subr.mxu0 0.0
    %1389 = vmatpush1.msra.mxu0 0.0
    %1390 = vmatprep.subr.mxu0 0.0
    %1391 = vmatpush1.msra.mxu0 0.0
    %1392 = vmatprep.subr.mxu0 0.0
    %1393 = vmatpush1.msra.mxu0 0.0
    %1394 = vmatprep.subr.mxu0 0.0
    %1395 = vmatpush1.msra.mxu0 0.0
    %1396 = vmatprep.subr.mxu0 0.0
    %1397 = vmatpush1.msra.mxu0 0.0
    %1398 = vmatprep.subr.mxu0 0.0
    %1399 = vmatpush1.msra.mxu0 0.0
    %1400 = vmatprep.subr.mxu0 0.0
    %1401 = vmatpush1.msra.mxu0 0.0
    %1402 = vmatprep.subr.mxu0 0.0
    %1403 = vmatpush1.msra.mxu0 0.0
    %1404 = vmatprep.subr.mxu0 0.0
    %1405 = vmatpush1.msra.mxu0 0.0
    %1406 = vmatprep.subr.mxu0 0.0
    %1407 = vmatpush1.msra.mxu0 0.0
    %1408 = vmatprep.subr.mxu0 0.0
    %1409 = vmatpush1.msra.mxu0 0.0
    %1410 = vmatprep.subr.mxu0 0.0
    %1411 = vmatpush1.msra.mxu0 0.0
    %1412 = vmatprep.subr.mxu0 0.0
    %1413 = vmatpush1.msra.mxu0 0.0
    %1414 = vmatprep.subr.mxu0 0.0
    %1415 = vmatpush1.msra.mxu0 0.0
    %1416 = vmatprep.subr.mxu0 0.0
    %1417 = vmatpush1.msra.mxu0 0.0
    %1418 = vmatprep.subr.mxu0 0.0
    %1419 = vmatpush1.msra.mxu0 0.0
    %1420 = vmatprep.subr.mxu0 0.0
    %1421 = vmatpush1.msra.mxu0 0.0
    %1422 = vmatprep.subr.mxu0 0.0
    %1423 = vmatpush1.msra.mxu0 0.0
    %1424 = vmatprep.subr.mxu0 0.0
    %1425 = vmatpush1.msra.mxu0 0.0
    %1426 = vmatprep.subr.mxu0 0.0
    %1427 = vmatpush1.msra.mxu0 0.0
    %1428 = vmatprep.subr.mxu0 0.0
    %1429 = vmatpush1.msra.mxu0 0.0
    %1430 = vmatprep.mubr.f32.mxu0 0.0
    %1431 = vmatmul.mubr.f32.gmra.mrb[0].mxu0 %v1364
    %v1432 = vpop.f32.mrb[0].mxu0
    %v1433 = vadd.f32 %v81, %v1432
    %v1434 = vpop.f32.mrb[0].mxu0
    %1435 = vdwg.mxu0
    %v1436 = vxor.u32 %v1433, 2147483648
    %v1437 = vmul.f32 %v1436, 1.442695
    %v1438 = vpow.pop %v1437
    %v1439 = vadd.f32 %v1438, 1.0
    %v1440 = vrcp.pop %v1439
    %v1441 = vmul.f32 1.0, %v1440
    %v1442 = vtanh.pop %v1433
    %v1443 = vmul.f32 %v1441, %v1250
    %1445 = vrot.lane.b32.xlu0 %v1442, 64
    %v1446 = vpop.permute.xlu0 %1445
    %v1448 = vmul.f32 %v1441, %v1446
    %1450 = vrot.lane.b32.xlu0 %v1448, 32
    %v1451 = vpop.permute.xlu0 %1450
    %v1453 = vadd.f32 %v1443, %v1451
    %v1454 = vtanh.pop %v1453
    %1456 = vrot.lane.b32.xlu0 %v1454, 64
    %v1457 = vpop.permute.xlu0 %1456
    %v1459 = vmul.f32 %v1441, %v1457
    %v1460 = vsel %vm106, %v1356, 0
    %1462 = vmatprep.subr.mxu0 0.0
    %1463 = vmatpush1.msra.mxu0 %v62
    %1464 = vmatprep.subr.mxu0 0.0
    %1465 = vmatpush1.msra.mxu0 %v63
    %1466 = vmatprep.subr.mxu0 0.0
    %1467 = vmatpush1.msra.mxu0 %v64
    %1468 = vmatprep.subr.mxu0 0.0
    %1469 = vmatpush1.msra.mxu0 %v65
    %1470 = vmatprep.subr.mxu0 0.0
    %1471 = vmatpush1.msra.mxu0 0.0
    %1472 = vmatprep.subr.mxu0 0.0
    %1473 = vmatpush1.msra.mxu0 0.0
    %1474 = vmatprep.subr.mxu0 0.0
    %1475 = vmatpush1.msra.mxu0 0.0
    %1476 = vmatprep.subr.mxu0 0.0
    %1477 = vmatpush1.msra.mxu0 0.0
    %1478 = vmatprep.subr.mxu0 0.0
    %1479 = vmatpush1.msra.mxu0 0.0
    %1480 = vmatprep.subr.mxu0 0.0
    %1481 = vmatpush1.msra.mxu0 0.0
    %1482 = vmatprep.subr.mxu0 0.0
    %1483 = vmatpush1.msra.mxu0 0.0
    %1484 = vmatprep.subr.mxu0 0.0
    %1485 = vmatpush1.msra.mxu0 0.0
    %1486 = vmatprep.subr.mxu0 0.0
    %1487 = vmatpush1.msra.mxu0 0.0
    %1488 = vmatprep.subr.mxu0 0.0
    %1489 = vmatpush1.msra.mxu0 0.0
    %1490 = vmatprep.subr.mxu0 0.0
    %1491 = vmatpush1.msra.mxu0 0.0
    %1492 = vmatprep.subr.mxu0 0.0
    %1493 = vmatpush1.msra.mxu0 0.0
    %1494 = vmatprep.subr.mxu0 0.0
    %1495 = vmatpush1.msra.mxu0 0.0
    %1496 = vmatprep.subr.mxu0 0.0
    %1497 = vmatpush1.msra.mxu0 0.0
    %1498 = vmatprep.subr.mxu0 0.0
    %1499 = vmatpush1.msra.mxu0 0.0
    %1500 = vmatprep.subr.mxu0 0.0
    %1501 = vmatpush1.msra.mxu0 0.0
    %1502 = vmatprep.subr.mxu0 0.0
    %1503 = vmatpush1.msra.mxu0 0.0
    %1504 = vmatprep.subr.mxu0 0.0
    %1505 = vmatpush1.msra.mxu0 0.0
    %1506 = vmatprep.subr.mxu0 0.0
    %1507 = vmatpush1.msra.mxu0 0.0
    %1508 = vmatprep.subr.mxu0 0.0
    %1509 = vmatpush1.msra.mxu0 0.0
    %1510 = vmatprep.subr.mxu0 0.0
    %1511 = vmatpush1.msra.mxu0 0.0
    %1512 = vmatprep.subr.mxu0 0.0
    %1513 = vmatpush1.msra.mxu0 0.0
    %1514 = vmatprep.subr.mxu0 0.0
    %1515 = vmatpush1.msra.mxu0 0.0
    %1516 = vmatprep.subr.mxu0 0.0
    %1517 = vmatpush1.msra.mxu0 0.0
    %1518 = vmatprep.subr.mxu0 0.0
    %1519 = vmatpush1.msra.mxu0 0.0
    %1520 = vmatprep.subr.mxu0 0.0
    %1521 = vmatpush1.msra.mxu0 0.0
    %1522 = vmatprep.subr.mxu0 0.0
    %1523 = vmatpush1.msra.mxu0 0.0
    %1524 = vmatprep.subr.mxu0 0.0
    %1525 = vmatpush1.msra.mxu0 0.0
    %1526 = vmatprep.mubr.f32.mxu0 0.0
    %1527 = vmatmul.mubr.f32.gmra.mrb[0].mxu0 %v1460
    %v1528 = vpop.f32.mrb[0].mxu0
    %v1529 = vadd.f32 0.0, %v1528
    %v1530 = vpop.f32.mrb[0].mxu0
    %1531 = vdwg.mxu0
    %v1532 = vadd.f32 %v231, %v1529
    %v1533 = vxor.u32 %v1532, 2147483648
    %v1534 = vmul.f32 %v1533, 1.442695
    %v1535 = vpow.pop %v1534
    %v1536 = vadd.f32 %v1535, 1.0
    %v1537 = vrcp.pop %v1536
    %v1538 = vmul.f32 1.0, %v1537
    %v1539 = vtanh.pop %v1532
    %v1540 = vmul.f32 %v1538, %v1347
    %1542 = vrot.lane.b32.xlu0 %v1539, 64
    %v1543 = vpop.permute.xlu0 %1542
    %v1545 = vmul.f32 %v1538, %v1543
    %1547 = vrot.lane.b32.xlu0 %v1545, 32
    %v1548 = vpop.permute.xlu0 %1547
    %v1550 = vadd.f32 %v1540, %v1548
    %v1551 = vtanh.pop %v1550
    %1553 = vrot.lane.b32.xlu0 %v1551, 64
    %v1554 = vpop.permute.xlu0 %1553
    %v1556 = vmul.f32 %v1538, %v1554
    %1558 = vrot.lane.b32.xlu0 %v1556, 32
    %v1559 = vpop.permute.xlu0 %1558
    %1562 = vrot.lane.b32.xlu0 %v1459, 64
    %v1563 = vpop.permute.xlu0 %1562
    %v1565 = vsel %vm106, %v1559, %v1563
    %v1567 = vsel %vm347, %v1565, 0
    %1569 = vmatprep.subr.mxu0 0.0
    %1570 = vmatpush1.msra.mxu0 %v66
    %1571 = vmatprep.subr.mxu0 0.0
    %1572 = vmatpush1.msra.mxu0 %v67
    %1573 = vmatprep.subr.mxu0 0.0
    %1574 = vmatpush1.msra.mxu0 %v68
    %1575 = vmatprep.subr.mxu0 0.0
    %1576 = vmatpush1.msra.mxu0 %v69
    %1577 = vmatprep.subr.mxu0 0.0
    %1578 = vmatpush1.msra.mxu0 %v70
    %1579 = vmatprep.subr.mxu0 0.0
    %1580 = vmatpush1.msra.mxu0 %v71
    %1581 = vmatprep.subr.mxu0 0.0
    %1582 = vmatpush1.msra.mxu0 %v72
    %1583 = vmatprep.subr.mxu0 0.0
    %1584 = vmatpush1.msra.mxu0 %v73
    %1585 = vmatprep.subr.mxu0 0.0
    %1586 = vmatpush1.msra.mxu0 0.0
    %1587 = vmatprep.subr.mxu0 0.0
    %1588 = vmatpush1.msra.mxu0 0.0
    %1589 = vmatprep.subr.mxu0 0.0
    %1590 = vmatpush1.msra.mxu0 0.0
    %1591 = vmatprep.subr.mxu0 0.0
    %1592 = vmatpush1.msra.mxu0 0.0
    %1593 = vmatprep.subr.mxu0 0.0
    %1594 = vmatpush1.msra.mxu0 0.0
    %1595 = vmatprep.subr.mxu0 0.0
    %1596 = vmatpush1.msra.mxu0 0.0
    %1597 = vmatprep.subr.mxu0 0.0
    %1598 = vmatpush1.msra.mxu0 0.0
    %1599 = vmatprep.subr.mxu0 0.0
    %1600 = vmatpush1.msra.mxu0 0.0
    %1601 = vmatprep.subr.mxu0 0.0
    %1602 = vmatpush1.msra.mxu0 0.0
    %1603 = vmatprep.subr.mxu0 0.0
    %1604 = vmatpush1.msra.mxu0 0.0
    %1605 = vmatprep.subr.mxu0 0.0
    %1606 = vmatpush1.msra.mxu0 0.0
    %1607 = vmatprep.subr.mxu0 0.0
    %1608 = vmatpush1.msra.mxu0 0.0
    %1609 = vmatprep.subr.mxu0 0.0
    %1610 = vmatpush1.msra.mxu0 0.0
    %1611 = vmatprep.subr.mxu0 0.0
    %1612 = vmatpush1.msra.mxu0 0.0
    %1613 = vmatprep.subr.mxu0 0.0
    %1614 = vmatpush1.msra.mxu0 0.0
    %1615 = vmatprep.subr.mxu0 0.0
    %1616 = vmatpush1.msra.mxu0 0.0
    %1617 = vmatprep.subr.mxu0 0.0
    %1618 = vmatpush1.msra.mxu0 0.0
    %1619 = vmatprep.subr.mxu0 0.0
    %1620 = vmatpush1.msra.mxu0 0.0
    %1621 = vmatprep.subr.mxu0 0.0
    %1622 = vmatpush1.msra.mxu0 0.0
    %1623 = vmatprep.subr.mxu0 0.0
    %1624 = vmatpush1.msra.mxu0 0.0
    %1625 = vmatprep.subr.mxu0 0.0
    %1626 = vmatpush1.msra.mxu0 0.0
    %1627 = vmatprep.subr.mxu0 0.0
    %1628 = vmatpush1.msra.mxu0 0.0
    %1629 = vmatprep.subr.mxu0 0.0
    %1630 = vmatpush1.msra.mxu0 0.0
    %1631 = vmatprep.subr.mxu0 0.0
    %1632 = vmatpush1.msra.mxu0 0.0
    %1633 = vmatprep.mubr.f32.mxu0 0.0
    %1634 = vmatmul.mubr.f32.gmra.mrb[0].mxu0 %v1567
    %v1635 = vpop.f32.mrb[0].mxu0
    %v1636 = vadd.f32 %v81, %v1635
    %v1637 = vpop.f32.mrb[0].mxu0
    %1638 = vdwg.mxu0
    %v1639 = vxor.u32 %v1636, 2147483648
    %v1640 = vmul.f32 %v1639, 1.442695
    %v1641 = vpow.pop %v1640
    %v1642 = vadd.f32 %v1641, 1.0
    %v1643 = vrcp.pop %v1642
    %v1644 = vmul.f32 1.0, %v1643
    %v1645 = vtanh.pop %v1636
    %v1646 = vmul.f32 %v1644, %v1453
    %1648 = vrot.lane.b32.xlu0 %v1645, 64
    %v1649 = vpop.permute.xlu0 %1648
    %v1651 = vmul.f32 %v1644, %v1649
    %1653 = vrot.lane.b32.xlu0 %v1651, 32
    %v1654 = vpop.permute.xlu0 %1653
    %v1656 = vadd.f32 %v1646, %v1654
    %v1657 = vtanh.pop %v1656
    %1659 = vrot.lane.b32.xlu0 %v1657, 64
    %v1660 = vpop.permute.xlu0 %1659
    %v1662 = vmul.f32 %v1644, %v1660
    %v1663 = vsel %vm106, %v1559, 0
    %1665 = vmatprep.subr.mxu0 0.0
    %1666 = vmatpush1.msra.mxu0 %v62
    %1667 = vmatprep.subr.mxu0 0.0
    %1668 = vmatpush1.msra.mxu0 %v63
    %1669 = vmatprep.subr.mxu0 0.0
    %1670 = vmatpush1.msra.mxu0 %v64
    %1671 = vmatprep.subr.mxu0 0.0
    %1672 = vmatpush1.msra.mxu0 %v65
    %1673 = vmatprep.subr.mxu0 0.0
    %1674 = vmatpush1.msra.mxu0 0.0
    %1675 = vmatprep.subr.mxu0 0.0
    %1676 = vmatpush1.msra.mxu0 0.0
    %1677 = vmatprep.subr.mxu0 0.0
    %1678 = vmatpush1.msra.mxu0 0.0
    %1679 = vmatprep.subr.mxu0 0.0
    %1680 = vmatpush1.msra.mxu0 0.0
    %1681 = vmatprep.subr.mxu0 0.0
    %1682 = vmatpush1.msra.mxu0 0.0
    %1683 = vmatprep.subr.mxu0 0.0
    %1684 = vmatpush1.msra.mxu0 0.0
    %1685 = vmatprep.subr.mxu0 0.0
    %1686 = vmatpush1.msra.mxu0 0.0
    %1687 = vmatprep.subr.mxu0 0.0
    %1688 = vmatpush1.msra.mxu0 0.0
    %1689 = vmatprep.subr.mxu0 0.0
    %1690 = vmatpush1.msra.mxu0 0.0
    %1691 = vmatprep.subr.mxu0 0.0
    %1692 = vmatpush1.msra.mxu0 0.0
    %1693 = vmatprep.subr.mxu0 0.0
    %1694 = vmatpush1.msra.mxu0 0.0
    %1695 = vmatprep.subr.mxu0 0.0
    %1696 = vmatpush1.msra.mxu0 0.0
    %1697 = vmatprep.subr.mxu0 0.0
    %1698 = vmatpush1.msra.mxu0 0.0
    %1699 = vmatprep.subr.mxu0 0.0
    %1700 = vmatpush1.msra.mxu0 0.0
    %1701 = vmatprep.subr.mxu0 0.0
    %1702 = vmatpush1.msra.mxu0 0.0
    %1703 = vmatprep.subr.mxu0 0.0
    %1704 = vmatpush1.msra.mxu0 0.0
    %1705 = vmatprep.subr.mxu0 0.0
    %1706 = vmatpush1.msra.mxu0 0.0
    %1707 = vmatprep.subr.mxu0 0.0
    %1708 = vmatpush1.msra.mxu0 0.0
    %1709 = vmatprep.subr.mxu0 0.0
    %1710 = vmatpush1.msra.mxu0 0.0
    %1711 = vmatprep.subr.mxu0 0.0
    %1712 = vmatpush1.msra.mxu0 0.0
    %1713 = vmatprep.subr.mxu0 0.0
    %1714 = vmatpush1.msra.mxu0 0.0
    %1715 = vmatprep.subr.mxu0 0.0
    %1716 = vmatpush1.msra.mxu0 0.0
    %1717 = vmatprep.subr.mxu0 0.0
    %1718 = vmatpush1.msra.mxu0 0.0
    %1719 = vmatprep.subr.mxu0 0.0
    %1720 = vmatpush1.msra.mxu0 0.0
    %1721 = vmatprep.subr.mxu0 0.0
    %1722 = vmatpush1.msra.mxu0 0.0
    %1723 = vmatprep.subr.mxu0 0.0
    %1724 = vmatpush1.msra.mxu0 0.0
    %1725 = vmatprep.subr.mxu0 0.0
    %1726 = vmatpush1.msra.mxu0 0.0
    %1727 = vmatprep.subr.mxu0 0.0
    %1728 = vmatpush1.msra.mxu0 0.0
    %1729 = vmatprep.mubr.f32.mxu0 0.0
    %1730 = vmatmul.mubr.f32.gmra.mrb[0].mxu0 %v1663
    %v1731 = vpop.f32.mrb[0].mxu0
    %v1732 = vadd.f32 0.0, %v1731
    %v1733 = vpop.f32.mrb[0].mxu0
    %1734 = vdwg.mxu0
    %v1735 = vadd.f32 %v236, %v1732
    %v1736 = vxor.u32 %v1735, 2147483648
    %v1737 = vmul.f32 %v1736, 1.442695
    %v1738 = vpow.pop %v1737
    %v1739 = vadd.f32 %v1738, 1.0
    %v1740 = vrcp.pop %v1739
    %v1741 = vmul.f32 1.0, %v1740
    %v1742 = vtanh.pop %v1735
    %v1743 = vmul.f32 %v1741, %v1550
    %1745 = vrot.lane.b32.xlu0 %v1742, 64
    %v1746 = vpop.permute.xlu0 %1745
    %v1748 = vmul.f32 %v1741, %v1746
    %1750 = vrot.lane.b32.xlu0 %v1748, 32
    %v1751 = vpop.permute.xlu0 %1750
    %v1753 = vadd.f32 %v1743, %v1751
    %v1754 = vtanh.pop %v1753
    %1756 = vrot.lane.b32.xlu0 %v1754, 64
    %v1757 = vpop.permute.xlu0 %1756
    %v1759 = vmul.f32 %v1741, %v1757
    %1761 = vrot.lane.b32.xlu0 %v1759, 32
    %v1762 = vpop.permute.xlu0 %1761
    %1765 = vrot.lane.b32.xlu0 %v1662, 64
    %v1766 = vpop.permute.xlu0 %1765
    %v1768 = vsel %vm106, %v1762, %v1766
    %v1770 = vsel %vm347, %v1768, 0
    %1772 = vmatprep.subr.mxu0 0.0
    %1773 = vmatpush1.msra.mxu0 %v66
    %1774 = vmatprep.subr.mxu0 0.0
    %1775 = vmatpush1.msra.mxu0 %v67
    %1776 = vmatprep.subr.mxu0 0.0
    %1777 = vmatpush1.msra.mxu0 %v68
    %1778 = vmatprep.subr.mxu0 0.0
    %1779 = vmatpush1.msra.mxu0 %v69
    %1780 = vmatprep.subr.mxu0 0.0
    %1781 = vmatpush1.msra.mxu0 %v70
    %1782 = vmatprep.subr.mxu0 0.0
    %1783 = vmatpush1.msra.mxu0 %v71
    %1784 = vmatprep.subr.mxu0 0.0
    %1785 = vmatpush1.msra.mxu0 %v72
    %1786 = vmatprep.subr.mxu0 0.0
    %1787 = vmatpush1.msra.mxu0 %v73
    %1788 = vmatprep.subr.mxu0 0.0
    %1789 = vmatpush1.msra.mxu0 0.0
    %1790 = vmatprep.subr.mxu0 0.0
    %1791 = vmatpush1.msra.mxu0 0.0
    %1792 = vmatprep.subr.mxu0 0.0
    %1793 = vmatpush1.msra.mxu0 0.0
    %1794 = vmatprep.subr.mxu0 0.0
    %1795 = vmatpush1.msra.mxu0 0.0
    %1796 = vmatprep.subr.mxu0 0.0
    %1797 = vmatpush1.msra.mxu0 0.0
    %1798 = vmatprep.subr.mxu0 0.0
    %1799 = vmatpush1.msra.mxu0 0.0
    %1800 = vmatprep.subr.mxu0 0.0
    %1801 = vmatpush1.msra.mxu0 0.0
    %1802 = vmatprep.subr.mxu0 0.0
    %1803 = vmatpush1.msra.mxu0 0.0
    %1804 = vmatprep.subr.mxu0 0.0
    %1805 = vmatpush1.msra.mxu0 0.0
    %1806 = vmatprep.subr.mxu0 0.0
    %1807 = vmatpush1.msra.mxu0 0.0
    %1808 = vmatprep.subr.mxu0 0.0
    %1809 = vmatpush1.msra.mxu0 0.0
    %1810 = vmatprep.subr.mxu0 0.0
    %1811 = vmatpush1.msra.mxu0 0.0
    %1812 = vmatprep.subr.mxu0 0.0
    %1813 = vmatpush1.msra.mxu0 0.0
    %1814 = vmatprep.subr.mxu0 0.0
    %1815 = vmatpush1.msra.mxu0 0.0
    %1816 = vmatprep.subr.mxu0 0.0
    %1817 = vmatpush1.msra.mxu0 0.0
    %1818 = vmatprep.subr.mxu0 0.0
    %1819 = vmatpush1.msra.mxu0 0.0
    %1820 = vmatprep.subr.mxu0 0.0
    %1821 = vmatpush1.msra.mxu0 0.0
    %1822 = vmatprep.subr.mxu0 0.0
    %1823 = vmatpush1.msra.mxu0 0.0
    %1824 = vmatprep.subr.mxu0 0.0
    %1825 = vmatpush1.msra.mxu0 0.0
    %1826 = vmatprep.subr.mxu0 0.0
    %1827 = vmatpush1.msra.mxu0 0.0
    %1828 = vmatprep.subr.mxu0 0.0
    %1829 = vmatpush1.msra.mxu0 0.0
    %1830 = vmatprep.subr.mxu0 0.0
    %1831 = vmatpush1.msra.mxu0 0.0
    %1832 = vmatprep.subr.mxu0 0.0
    %1833 = vmatpush1.msra.mxu0 0.0
    %1834 = vmatprep.subr.mxu0 0.0
    %1835 = vmatpush1.msra.mxu0 0.0
    %1836 = vmatprep.mubr.f32.mxu0 0.0
    %1837 = vmatmul.mubr.f32.gmra.mrb[0].mxu0 %v1770
    %v1838 = vpop.f32.mrb[0].mxu0
    %v1839 = vadd.f32 %v81, %v1838
    %v1840 = vpop.f32.mrb[0].mxu0
    %1841 = vdwg.mxu0
    %v1842 = vxor.u32 %v1839, 2147483648
    %v1843 = vmul.f32 %v1842, 1.442695
    %v1844 = vpow.pop %v1843
    %v1845 = vadd.f32 %v1844, 1.0
    %v1846 = vrcp.pop %v1845
    %v1847 = vmul.f32 1.0, %v1846
    %v1848 = vtanh.pop %v1839
    %v1849 = vmul.f32 %v1847, %v1656
    %1851 = vrot.lane.b32.xlu0 %v1848, 64
    %v1852 = vpop.permute.xlu0 %1851
    %v1854 = vmul.f32 %v1847, %v1852
    %1856 = vrot.lane.b32.xlu0 %v1854, 32
    %v1857 = vpop.permute.xlu0 %1856
    %v1859 = vadd.f32 %v1849, %v1857
    %v1860 = vtanh.pop %v1859
    %1862 = vrot.lane.b32.xlu0 %v1860, 64
    %v1863 = vpop.permute.xlu0 %1862
    %v1865 = vmul.f32 %v1847, %v1863
    %v1866 = vsel %vm106, %v1762, 0
    %1868 = vmatprep.subr.mxu0 0.0
    %1869 = vmatpush1.msra.mxu0 %v62
    %1870 = vmatprep.subr.mxu0 0.0
    %1871 = vmatpush1.msra.mxu0 %v63
    %1872 = vmatprep.subr.mxu0 0.0
    %1873 = vmatpush1.msra.mxu0 %v64
    %1874 = vmatprep.subr.mxu0 0.0
    %1875 = vmatpush1.msra.mxu0 %v65
    %1876 = vmatprep.subr.mxu0 0.0
    %1877 = vmatpush1.msra.mxu0 0.0
    %1878 = vmatprep.subr.mxu0 0.0
    %1879 = vmatpush1.msra.mxu0 0.0
    %1880 = vmatprep.subr.mxu0 0.0
    %1881 = vmatpush1.msra.mxu0 0.0
    %1882 = vmatprep.subr.mxu0 0.0
    %1883 = vmatpush1.msra.mxu0 0.0
    %1884 = vmatprep.subr.mxu0 0.0
    %1885 = vmatpush1.msra.mxu0 0.0
    %1886 = vmatprep.subr.mxu0 0.0
    %1887 = vmatpush1.msra.mxu0 0.0
    %1888 = vmatprep.subr.mxu0 0.0
    %1889 = vmatpush1.msra.mxu0 0.0
    %1890 = vmatprep.subr.mxu0 0.0
    %1891 = vmatpush1.msra.mxu0 0.0
    %1892 = vmatprep.subr.mxu0 0.0
    %1893 = vmatpush1.msra.mxu0 0.0
    %1894 = vmatprep.subr.mxu0 0.0
    %1895 = vmatpush1.msra.mxu0 0.0
    %1896 = vmatprep.subr.mxu0 0.0
    %1897 = vmatpush1.msra.mxu0 0.0
    %1898 = vmatprep.subr.mxu0 0.0
    %1899 = vmatpush1.msra.mxu0 0.0
    %1900 = vmatprep.subr.mxu0 0.0
    %1901 = vmatpush1.msra.mxu0 0.0
    %1902 = vmatprep.subr.mxu0 0.0
    %1903 = vmatpush1.msra.mxu0 0.0
    %1904 = vmatprep.subr.mxu0 0.0
    %1905 = vmatpush1.msra.mxu0 0.0
    %1906 = vmatprep.subr.mxu0 0.0
    %1907 = vmatpush1.msra.mxu0 0.0
    %1908 = vmatprep.subr.mxu0 0.0
    %1909 = vmatpush1.msra.mxu0 0.0
    %1910 = vmatprep.subr.mxu0 0.0
    %1911 = vmatpush1.msra.mxu0 0.0
    %1912 = vmatprep.subr.mxu0 0.0
    %1913 = vmatpush1.msra.mxu0 0.0
    %1914 = vmatprep.subr.mxu0 0.0
    %1915 = vmatpush1.msra.mxu0 0.0
    %1916 = vmatprep.subr.mxu0 0.0
    %1917 = vmatpush1.msra.mxu0 0.0
    %1918 = vmatprep.subr.mxu0 0.0
    %1919 = vmatpush1.msra.mxu0 0.0
    %1920 = vmatprep.subr.mxu0 0.0
    %1921 = vmatpush1.msra.mxu0 0.0
    %1922 = vmatprep.subr.mxu0 0.0
    %1923 = vmatpush1.msra.mxu0 0.0
    %1924 = vmatprep.subr.mxu0 0.0
    %1925 = vmatpush1.msra.mxu0 0.0
    %1926 = vmatprep.subr.mxu0 0.0
    %1927 = vmatpush1.msra.mxu0 0.0
    %1928 = vmatprep.subr.mxu0 0.0
    %1929 = vmatpush1.msra.mxu0 0.0
    %1930 = vmatprep.subr.mxu0 0.0
    %1931 = vmatpush1.msra.mxu0 0.0
    %1932 = vmatprep.mubr.f32.mxu0 0.0
    %1933 = vmatmul.mubr.f32.gmra.mrb[0].mxu0 %v1866
    %v1934 = vpop.f32.mrb[0].mxu0
    %v1935 = vadd.f32 0.0, %v1934
    %v1936 = vpop.f32.mrb[0].mxu0
    %1937 = vdwg.mxu0
    %v1938 = vadd.f32 %v241, %v1935
    %v1939 = vxor.u32 %v1938, 2147483648
    %v1940 = vmul.f32 %v1939, 1.442695
    %v1941 = vpow.pop %v1940
    %v1942 = vadd.f32 %v1941, 1.0
    %v1943 = vrcp.pop %v1942
    %v1944 = vmul.f32 1.0, %v1943
    %v1945 = vtanh.pop %v1938
    %v1946 = vmul.f32 %v1944, %v1753
    %1948 = vrot.lane.b32.xlu0 %v1945, 64
    %v1949 = vpop.permute.xlu0 %1948
    %v1951 = vmul.f32 %v1944, %v1949
    %1953 = vrot.lane.b32.xlu0 %v1951, 32
    %v1954 = vpop.permute.xlu0 %1953
    %v1956 = vadd.f32 %v1946, %v1954
    %v1957 = vtanh.pop %v1956
    %1959 = vrot.lane.b32.xlu0 %v1957, 64
    %v1960 = vpop.permute.xlu0 %1959
    %v1962 = vmul.f32 %v1944, %v1960
    %1964 = vrot.lane.b32.xlu0 %v1962, 32
    %v1965 = vpop.permute.xlu0 %1964
    %1968 = vrot.lane.b32.xlu0 %v1865, 64
    %v1969 = vpop.permute.xlu0 %1968
    %v1971 = vsel %vm106, %v1965, %v1969
    %v1973 = vsel %vm347, %v1971, 0
    %1975 = vmatprep.subr.mxu0 0.0
    %1976 = vmatpush1.msra.mxu0 %v66
    %1977 = vmatprep.subr.mxu0 0.0
    %1978 = vmatpush1.msra.mxu0 %v67
    %1979 = vmatprep.subr.mxu0 0.0
    %1980 = vmatpush1.msra.mxu0 %v68
    %1981 = vmatprep.subr.mxu0 0.0
    %1982 = vmatpush1.msra.mxu0 %v69
    %1983 = vmatprep.subr.mxu0 0.0
    %1984 = vmatpush1.msra.mxu0 %v70
    %1985 = vmatprep.subr.mxu0 0.0
    %1986 = vmatpush1.msra.mxu0 %v71
    %1987 = vmatprep.subr.mxu0 0.0
    %1988 = vmatpush1.msra.mxu0 %v72
    %1989 = vmatprep.subr.mxu0 0.0
    %1990 = vmatpush1.msra.mxu0 %v73
    %1991 = vmatprep.subr.mxu0 0.0
    %1992 = vmatpush1.msra.mxu0 0.0
    %1993 = vmatprep.subr.mxu0 0.0
    %1994 = vmatpush1.msra.mxu0 0.0
    %1995 = vmatprep.subr.mxu0 0.0
    %1996 = vmatpush1.msra.mxu0 0.0
    %1997 = vmatprep.subr.mxu0 0.0
    %1998 = vmatpush1.msra.mxu0 0.0
    %1999 = vmatprep.subr.mxu0 0.0
    %2000 = vmatpush1.msra.mxu0 0.0
    %2001 = vmatprep.subr.mxu0 0.0
    %2002 = vmatpush1.msra.mxu0 0.0
    %2003 = vmatprep.subr.mxu0 0.0
    %2004 = vmatpush1.msra.mxu0 0.0
    %2005 = vmatprep.subr.mxu0 0.0
    %2006 = vmatpush1.msra.mxu0 0.0
    %2007 = vmatprep.subr.mxu0 0.0
    %2008 = vmatpush1.msra.mxu0 0.0
    %2009 = vmatprep.subr.mxu0 0.0
    %2010 = vmatpush1.msra.mxu0 0.0
    %2011 = vmatprep.subr.mxu0 0.0
    %2012 = vmatpush1.msra.mxu0 0.0
    %2013 = vmatprep.subr.mxu0 0.0
    %2014 = vmatpush1.msra.mxu0 0.0
    %2015 = vmatprep.subr.mxu0 0.0
    %2016 = vmatpush1.msra.mxu0 0.0
    %2017 = vmatprep.subr.mxu0 0.0
    %2018 = vmatpush1.msra.mxu0 0.0
    %2019 = vmatprep.subr.mxu0 0.0
    %2020 = vmatpush1.msra.mxu0 0.0
    %2021 = vmatprep.subr.mxu0 0.0
    %2022 = vmatpush1.msra.mxu0 0.0
    %2023 = vmatprep.subr.mxu0 0.0
    %2024 = vmatpush1.msra.mxu0 0.0
    %2025 = vmatprep.subr.mxu0 0.0
    %2026 = vmatpush1.msra.mxu0 0.0
    %2027 = vmatprep.subr.mxu0 0.0
    %2028 = vmatpush1.msra.mxu0 0.0
    %2029 = vmatprep.subr.mxu0 0.0
    %2030 = vmatpush1.msra.mxu0 0.0
    %2031 = vmatprep.subr.mxu0 0.0
    %2032 = vmatpush1.msra.mxu0 0.0
    %2033 = vmatprep.subr.mxu0 0.0
    %2034 = vmatpush1.msra.mxu0 0.0
    %2035 = vmatprep.subr.mxu0 0.0
    %2036 = vmatpush1.msra.mxu0 0.0
    %2037 = vmatprep.subr.mxu0 0.0
    %2038 = vmatpush1.msra.mxu0 0.0
    %2039 = vmatprep.mubr.f32.mxu0 0.0
    %2040 = vmatmul.mubr.f32.gmra.mrb[0].mxu0 %v1973
    %v2041 = vpop.f32.mrb[0].mxu0
    %v2042 = vadd.f32 %v81, %v2041
    %v2043 = vpop.f32.mrb[0].mxu0
    %2044 = vdwg.mxu0
    %v2045 = vxor.u32 %v2042, 2147483648
    %v2046 = vmul.f32 %v2045, 1.442695
    %v2047 = vpow.pop %v2046
    %v2048 = vadd.f32 %v2047, 1.0
    %v2049 = vrcp.pop %v2048
    %v2050 = vmul.f32 1.0, %v2049
    %v2051 = vtanh.pop %v2042
    %v2052 = vmul.f32 %v2050, %v1859
    %2054 = vrot.lane.b32.xlu0 %v2051, 64
    %v2055 = vpop.permute.xlu0 %2054
    %v2057 = vmul.f32 %v2050, %v2055
    %2059 = vrot.lane.b32.xlu0 %v2057, 32
    %v2060 = vpop.permute.xlu0 %2059
    %v2062 = vadd.f32 %v2052, %v2060
    %v2063 = vtanh.pop %v2062
    %2065 = vrot.lane.b32.xlu0 %v2063, 64
    %v2066 = vpop.permute.xlu0 %2065
    %v2068 = vmul.f32 %v2050, %v2066
    %2070 = vrot.lane.b32.xlu0 %v444, 32
    %v2071 = vpop.permute.xlu0 %2070
    %2072 = vrot.lane.b32.xlu0 %v647, 32
    %v2073 = vpop.permute.xlu0 %2072
    %2074 = vrot.lane.b32.xlu0 %v850, 32
    %v2075 = vpop.permute.xlu0 %2074
    %2076 = vrot.lane.b32.xlu0 %v1053, 32
    %v2077 = vpop.permute.xlu0 %2076
    %2078 = vrot.lane.b32.xlu0 %v1256, 32
    %v2079 = vpop.permute.xlu0 %2078
    %2080 = vrot.lane.b32.xlu0 %v1459, 32
    %v2081 = vpop.permute.xlu0 %2080
    %2082 = vrot.lane.b32.xlu0 %v1662, 32
    %v2083 = vpop.permute.xlu0 %2082
    %2084 = vrot.lane.b32.xlu0 %v1865, 32
    %v2085 = vpop.permute.xlu0 %2084
    %2086 = vrot.lane.b32.xlu0 %v2068, 32
    %v2087 = vpop.permute.xlu0 %2086
    %vm2097 = vcmask 588800
    %v2099 = vsel %vm2097, %v88, 0
    %v2102 = vsel %vm2097, %v89, 0
    %v2105 = vsel %vm2097, %v90, 0
    %2107 = vmatprep.subr.mxu0 0.0
    %2108 = vmatpush1.msra.mxu0 %v2071
    %2109 = vmatprep.subr.mxu0 0.0
    %2110 = vmatpush1.msra.mxu0 %v2073
    %2111 = vmatprep.subr.mxu0 0.0
    %2112 = vmatpush1.msra.mxu0 %v2075
    %2113 = vmatprep.subr.mxu0 0.0
    %2114 = vmatpush1.msra.mxu0 %v2077
    %2115 = vmatprep.subr.mxu0 0.0
    %2116 = vmatpush1.msra.mxu0 %v2079
    %2117 = vmatprep.subr.mxu0 0.0
    %2118 = vmatpush1.msra.mxu0 %v2081
    %2119 = vmatprep.subr.mxu0 0.0
    %2120 = vmatpush1.msra.mxu0 %v2083
    %2121 = vmatprep.subr.mxu0 0.0
    %2122 = vmatpush1.msra.mxu0 %v2085
    %2123 = vmatprep.subr.mxu0 0.0
    %2124 = vmatpush1.msra.mxu0 %v2087
    %2125 = vmatprep.subr.mxu0 0.0
    %2126 = vmatpush1.msra.mxu0 0.0
    %2127 = vmatprep.subr.mxu0 0.0
    %2128 = vmatpush1.msra.mxu0 0.0
    %2129 = vmatprep.subr.mxu0 0.0
    %2130 = vmatpush1.msra.mxu0 0.0
    %2131 = vmatprep.subr.mxu0 0.0
    %2132 = vmatpush1.msra.mxu0 0.0
    %2133 = vmatprep.subr.mxu0 0.0
    %2134 = vmatpush1.msra.mxu0 0.0
    %2135 = vmatprep.subr.mxu0 0.0
    %2136 = vmatpush1.msra.mxu0 0.0
    %2137 = vmatprep.subr.mxu0 0.0
    %2138 = vmatpush1.msra.mxu0 0.0
    %2139 = vmatprep.subr.mxu0 0.0
    %2140 = vmatpush1.msra.mxu0 0.0
    %2141 = vmatprep.subr.mxu0 0.0
    %2142 = vmatpush1.msra.mxu0 0.0
    %2143 = vmatprep.subr.mxu0 0.0
    %2144 = vmatpush1.msra.mxu0 0.0
    %2145 = vmatprep.subr.mxu0 0.0
    %2146 = vmatpush1.msra.mxu0 0.0
    %2147 = vmatprep.subr.mxu0 0.0
    %2148 = vmatpush1.msra.mxu0 0.0
    %2149 = vmatprep.subr.mxu0 0.0
    %2150 = vmatpush1.msra.mxu0 0.0
    %2151 = vmatprep.subr.mxu0 0.0
    %2152 = vmatpush1.msra.mxu0 0.0
    %2153 = vmatprep.subr.mxu0 0.0
    %2154 = vmatpush1.msra.mxu0 0.0
    %2155 = vmatprep.subr.mxu0 0.0
    %2156 = vmatpush1.msra.mxu0 0.0
    %2157 = vmatprep.subr.mxu0 0.0
    %2158 = vmatpush1.msra.mxu0 0.0
    %2159 = vmatprep.subr.mxu0 0.0
    %2160 = vmatpush1.msra.mxu0 0.0
    %2161 = vmatprep.subr.mxu0 0.0
    %2162 = vmatpush1.msra.mxu0 0.0
    %2163 = vmatprep.subr.mxu0 0.0
    %2164 = vmatpush1.msra.mxu0 0.0
    %2165 = vmatprep.subr.mxu0 0.0
    %2166 = vmatpush1.msra.mxu0 0.0
    %2167 = vmatprep.subr.mxu0 0.0
    %2168 = vmatpush1.msra.mxu0 0.0
    %2169 = vmatprep.subr.mxu0 0.0
    %2170 = vmatpush1.msra.mxu0 0.0
    %2171 = vmatprep.mubr.f32.mxu0 0.0
    %2172 = vmatmul.mubr.f32.gmra.mrb[0].mxu0 %v2099
    %v2173 = vpop.f32.mrb[0].mxu0
    %v2174 = vadd.f32 0.0, %v2173
    %v2175 = vpop.f32.mrb[0].mxu0
    %2176 = vmatprep.mubr.f32.mxu0 0.0
    %2177 = vmatmul.mubr.f32.gmra.mrb[0].mxu0 %v2102
    %v2178 = vpop.f32.mrb[0].mxu0
    %v2179 = vadd.f32 0.0, %v2178
    %v2180 = vpop.f32.mrb[0].mxu0
    %2181 = vmatprep.mubr.f32.mxu0 0.0
    %2182 = vmatmul.mubr.f32.gmra.mrb[0].mxu0 %v2105
    %v2183 = vpop.f32.mrb[0].mxu0
    %v2184 = vadd.f32 0.0, %v2183
    %v2185 = vpop.f32.mrb[0].mxu0
    %2186 = vdwg.mxu0
    %v2188 = vlaneseq
    %v2189 = vshrl.u32 %v2188, 7
    %v2190 = vsub.s32 0, %v2189
    %v2191 = vrot.slane %v87, %v2190
    %v2194 = vsel %vm106, %v2174, 0
    %v2197 = vsel %vm106, %v2179, 0
    %v2200 = vsel %vm106, %v2184, 0
    %2202 = vmatprep.subr.mxu0 0.0
    %2203 = vmatpush1.msra.mxu0 %v83
    %2204 = vmatprep.subr.mxu0 0.0
    %2205 = vmatpush1.msra.mxu0 %v84
    %2206 = vmatprep.subr.mxu0 0.0
    %2207 = vmatpush1.msra.mxu0 %v85
    %2208 = vmatprep.subr.mxu0 0.0
    %2209 = vmatpush1.msra.mxu0 %v86
    %2210 = vmatprep.subr.mxu0 0.0
    %2211 = vmatpush1.msra.mxu0 0.0
    %2212 = vmatprep.subr.mxu0 0.0
    %2213 = vmatpush1.msra.mxu0 0.0
    %2214 = vmatprep.subr.mxu0 0.0
    %2215 = vmatpush1.msra.mxu0 0.0
    %2216 = vmatprep.subr.mxu0 0.0
    %2217 = vmatpush1.msra.mxu0 0.0
    %2218 = vmatprep.subr.mxu0 0.0
    %2219 = vmatpush1.msra.mxu0 0.0
    %2220 = vmatprep.subr.mxu0 0.0
    %2221 = vmatpush1.msra.mxu0 0.0
    %2222 = vmatprep.subr.mxu0 0.0
    %2223 = vmatpush1.msra.mxu0 0.0
    %2224 = vmatprep.subr.mxu0 0.0
    %2225 = vmatpush1.msra.mxu0 0.0
    %2226 = vmatprep.subr.mxu0 0.0
    %2227 = vmatpush1.msra.mxu0 0.0
    %2228 = vmatprep.subr.mxu0 0.0
    %2229 = vmatpush1.msra.mxu0 0.0
    %2230 = vmatprep.subr.mxu0 0.0
    %2231 = vmatpush1.msra.mxu0 0.0
    %2232 = vmatprep.subr.mxu0 0.0
    %2233 = vmatpush1.msra.mxu0 0.0
    %2234 = vmatprep.subr.mxu0 0.0
    %2235 = vmatpush1.msra.mxu0 0.0
    %2236 = vmatprep.subr.mxu0 0.0
    %2237 = vmatpush1.msra.mxu0 0.0
    %2238 = vmatprep.subr.mxu0 0.0
    %2239 = vmatpush1.msra.mxu0 0.0
    %2240 = vmatprep.subr.mxu0 0.0
    %2241 = vmatpush1.msra.mxu0 0.0
    %2242 = vmatprep.subr.mxu0 0.0
    %2243 = vmatpush1.msra.mxu0 0.0
    %2244 = vmatprep.subr.mxu0 0.0
    %2245 = vmatpush1.msra.mxu0 0.0
    %2246 = vmatprep.subr.mxu0 0.0
    %2247 = vmatpush1.msra.mxu0 0.0
    %2248 = vmatprep.subr.mxu0 0.0
    %2249 = vmatpush1.msra.mxu0 0.0
    %2250 = vmatprep.subr.mxu0 0.0
    %2251 = vmatpush1.msra.mxu0 0.0
    %2252 = vmatprep.subr.mxu0 0.0
    %2253 = vmatpush1.msra.mxu0 0.0
    %2254 = vmatprep.subr.mxu0 0.0
    %2255 = vmatpush1.msra.mxu0 0.0
    %2256 = vmatprep.subr.mxu0 0.0
    %2257 = vmatpush1.msra.mxu0 0.0
    %2258 = vmatprep.subr.mxu0 0.0
    %2259 = vmatpush1.msra.mxu0 0.0
    %2260 = vmatprep.subr.mxu0 0.0
    %2261 = vmatpush1.msra.mxu0 0.0
    %2262 = vmatprep.subr.mxu0 0.0
    %2263 = vmatpush1.msra.mxu0 0.0
    %2264 = vmatprep.subr.mxu0 0.0
    %2265 = vmatpush1.msra.mxu0 0.0
    %2266 = vmatprep.mubr.f32.mxu0 0.0
    %2267 = vmatmul.mubr.f32.gmra.mrb[0].mxu0 %v2194
    %v2268 = vpop.f32.mrb[0].mxu0
    %v2269 = vadd.f32 %v2191, %v2268
    %v2270 = vpop.f32.mrb[0].mxu0
    %2271 = vmatprep.mubr.f32.mxu0 0.0
    %2272 = vmatmul.mubr.f32.gmra.mrb[0].mxu0 %v2197
    %v2273 = vpop.f32.mrb[0].mxu0
    %v2274 = vadd.f32 %v2191, %v2273
    %v2275 = vpop.f32.mrb[0].mxu0
    %2276 = vmatprep.mubr.f32.mxu0 0.0
    %2277 = vmatmul.mubr.f32.gmra.mrb[0].mxu0 %v2200
    %v2278 = vpop.f32.mrb[0].mxu0
    %v2279 = vadd.f32 %v2191, %v2278
    %v2280 = vpop.f32.mrb[0].mxu0
    %2281 = vdwg.mxu0
    %2282 = vst [vmem:[#allocation7] sm:$0xff] %v2269
    %2283 = vst [vmem:[#allocation7 + $0x8] sm:$0xff] %v2274
    %2284 = vst [vmem:[#allocation7 + $0x10] sm:$0xff] %v2279
    // Predicated region
    $region42: #{tpu_custom_call.1} parent=1 // pred_check
      _
    $region43: #{tpu_custom_call.1} parent=1 // pred_check_branch
      %2286 = sbr.rel (0) target = $region45
    $region44: #{tpu_custom_call.1} parent=1 // pred_region
      %s2288 = ssub.s32 384, 384
      %2289 = vsyncadd [#allocation4], %s2288
      %s2290 = sshll.u32 [#allocation7], 4
      %s2291 = int_to_ptr.vmem [resolvable:$true] %s2290
      %2296 = dma.vmem_to_hbm [thread:$0]  %s2291, 384, %s8, [#allocation4], 128, 128, 8
    $region45: #{tpu_custom_call.1} parent=1 // pred_fallthru
      _
    // Predicated region
    $region46: #{tpu_custom_call.1} parent=1 // pred_check
      _
    $region47: #{tpu_custom_call.1} parent=1 // pred_check_branch
      %2298 = sbr.rel (0) target = $region49
    $region48: #{tpu_custom_call.1} parent=1 // pred_region
      %2299 = dma.done [#allocation4], 384
    $region49: #{tpu_custom_call.1} parent=1 // pred_fallthru
      _
    %2300 = vsyncpa [#allocation3], 1
    %2301 = vsyncpa [#allocation6], 1
    %2302 = vsyncpa [#allocation4], 1

</llo_original>
